<compile_context>
chip_gen: v5e
topology: v5e:2x2
jax: 0.10.0
libtpu: 0.0.40
codegen_flags: <defaults>
</compile_context>

<pallas_src>
import jax
import jax.numpy as jnp
from jax import lax
from jax.experimental import pallas as pl
from jax.experimental.pallas import tpu as pltpu


def _round_up(x, m):
    return ((x + m - 1) // m) * m


def _vmem_capacity_bytes():
    try:
        cap = int(pltpu.get_tpu_info().vmem_capacity_bytes)
        if cap > 0:
            return cap
    except Exception:
        pass
    return 64 * 1024 * 1024  # conservative (v7x-sized) fallback


def _estimate_vmem_bytes(tq, hw, c, cqp, use_bf16, qk_itemsize, single_buffer_invariants):
    """Rough VMEM footprint of one grid step (scratch + blocks + temporaries)."""
    scr_item = 2 if use_bf16 else 4
    nbuf_inv = 1 if single_buffer_invariants else 2
    nkv = cqp + c
    kv_scratch = hw * nkv * scr_item                               # resident K|V
    x_block = hw * c * 4 * nbuf_inv                                # per-batch x block
    w_blocks = (c * cqp + c * nkv) * scr_item * nbuf_inv \
        + (cqp + nkv) * 4 * nbuf_inv                               # weights + biases
    out_block = tq * c * 4 * 2                                     # double-buffered out
    qk_block = tq * hw * qk_itemsize * 2                           # double-buffered QK
    # in-kernel temporaries: qk f32, e f32 (+ bf16 copy), q tile / pv / x tile
    temps = tq * hw * (8 + (2 if use_bf16 else 0)) + tq * (cqp + c) * 4 * 3
    return int(1.15 * (kv_scratch + x_block + w_blocks + out_block + qk_block + temps))


def _pick_tq(hw, c, cqp, use_bf16, qk_itemsize, budget, single_buffer_invariants=True):
    """Largest q-tile dividing HW whose estimated footprint fits the VMEM budget."""
    for t in (1024, 512, 256, 128, 64, 32, 16, 8):
        if hw % t:
            continue
        if _estimate_vmem_bytes(t, hw, c, cqp, use_bf16, qk_itemsize,
                                single_buffer_invariants) <= budget:
            return t
    return hw if hw < 8 else 8


def pam_forward(x_nchw, params, *, tq=None, use_bf16=False,
                qk_dtype=jnp.float32, n_qsplit=None):
    """PAM forward. x_nchw: (B, C, H, W) f32. Returns (out NCHW, QK (B,HW,HW))."""
    B, C, H, W = x_nchw.shape
    HW = H * W
    Cq = max(C // 8, 1)
    Cqp = _round_up(Cq, 128)       # lane-aligned padded Q/K width
    Nkv = Cqp + C                  # fused [K | V] projection width

    qk_itemsize = jnp.dtype(qk_dtype).itemsize
    vmem_cap = _vmem_capacity_bytes()
    vmem_limit = max(min(int(vmem_cap * 0.85), 128 * 1024 * 1024), 32 * 1024 * 1024)

    if tq is None:
        tq = _pick_tq(HW, C, Cqp, use_bf16, qk_itemsize, int(vmem_limit * 0.9))
    assert HW % tq == 0 and (tq == HW or tq % 8 == 0), (HW, tq)
    n_qt = HW // tq

    # Megacore q-split: useful when B is small (e.g. B=1 inference on v7x).
    if n_qsplit is None:
        n_qsplit = 2 if (B == 1 and n_qt % 2 == 0) else 1
    if n_qt % n_qsplit != 0:
        n_qsplit = 1
    n_per = n_qt // n_qsplit

    wq, bq, wk, bk, wv, bv, alpha = params
    proj_dtype = jnp.bfloat16 if use_bf16 else jnp.float32
    scr_dtype = jnp.bfloat16 if use_bf16 else jnp.float32

    # NCHW -> (B, HW, C): 1x1 conv == per-pixel matmul in this layout.
    x = jnp.transpose(x_nchw.reshape(B, C, HW), (0, 2, 1)).astype(jnp.float32)

    # Q weight padded to Cqp columns (zeros contribute exactly 0 to QK);
    # fused [K | V] weight with K zero-padded to Cqp columns.
    wq_pad = jnp.zeros((C, Cqp), jnp.float32)
    wq_pad = wq_pad.at[:, :Cq].set(jnp.transpose(wq.reshape(Cq, C))).astype(proj_dtype)
    bq_pad = jnp.zeros((1, Cqp), jnp.float32).at[0, :Cq].set(bq)
    w_kv = jnp.zeros((C, Nkv), jnp.float32)
    w_kv = w_kv.at[:, :Cq].set(jnp.transpose(wk.reshape(Cq, C)))
    w_kv = w_kv.at[:, Cqp:].set(jnp.transpose(wv.reshape(C, C)))
    w_kv = w_kv.astype(proj_dtype)
    b_kv = jnp.zeros((1, Nkv), jnp.float32)
    b_kv = b_kv.at[0, :Cq].set(bk)
    b_kv = b_kv.at[0, Cqp:].set(bv)
    alpha_s = jnp.asarray(alpha, jnp.float32).reshape(1)

    def kernel(x_ref, wq_ref, bq_ref, wkv_ref, bkv_ref, alpha_ref,
               out_ref, qk_ref, kv_sc):
        h = pl.program_id(1)
        qj = pl.program_id(2)
        x_view = x_ref.at[0]                                       # (HW, C) view

        # First q-tile of each (batch, q-split): fused K|V projection for the
        # whole batch element in one wide MXU pass, kept resident in VMEM.
        # On the bf16 path it is stored in bf16 (single cast, none per q-tile).
        @pl.when(qj == 0)
        def _():
            xk = x_view[...]
            if use_bf16:
                xk = xk.astype(jnp.bfloat16)
            kv = jnp.dot(xk, wkv_ref[...],
                         preferred_element_type=jnp.float32) + bkv_ref[...]
            kv_sc[...] = kv.astype(kv_sc.dtype)

        gq = h * n_per + qj
        q_start = pl.multiple_of(gq * tq, tq)
        x_tile = x_view[pl.ds(q_start, tq), :]                     # (tq, C) f32

        # Per-tile Q projection (kept out of the resident scratch and out of
        # the qj==0 bubble); padded columns are zero, lane-aligned output.
        xq = x_tile.astype(jnp.bfloat16) if use_bf16 else x_tile
        q_tile = jnp.dot(xq, wq_ref[...],
                         preferred_element_type=jnp.float32) + bq_ref[...]  # (tq, Cqp)

        k_all = kv_sc[:, 0:Cqp]                                    # (HW, Cqp)
        v_all = kv_sc[:, Cqp:]                                     # (HW, C)

        q_mm = q_tile.astype(kv_sc.dtype) if use_bf16 else q_tile
        # QK[i, j] = q_i . k_j — contract the channel dim of both operands
        # directly (no explicit transpose of K).
        qk = lax.dot_general(q_mm, k_all,
                             dimension_numbers=(((1,), (1,)), ((), ())),
                             preferred_element_type=jnp.float32)   # (tq, HW)
        qk_ref[0] = qk.astype(qk_ref.dtype)

        # Softmax with deferred normalization: un-normalized exp feeds the PV
        # matmul; the (tq, C) result is rescaled by 1/rowsum (exact divide on
        # only tq elements).  f32 exp keeps the row-sum accumulation accurate.
        m = jnp.max(qk, axis=-1, keepdims=True)
        e = jnp.exp(qk - m)
        l = jnp.sum(e, axis=-1, keepdims=True)
        e_mm = e.astype(kv_sc.dtype) if use_bf16 else e
        pv = jnp.dot(e_mm, v_all, preferred_element_type=jnp.float32)      # (tq, C)
        inv = 1.0 / l
        out_ref[0] = alpha_ref[0] * (pv * inv) + x_tile

    def build_in_specs(single_buffer_invariants):
        # x / weights / biases are grid-invariant within a batch element ->
        # single-buffer them to free VMEM (makes larger tq viable on v7x).
        kw = {"pipeline_mode": pl.Buffered(1)} if single_buffer_invariants else {}
        return [
            pl.BlockSpec((1, HW, C), lambda b, h, q: (b, 0, 0), **kw),
            pl.BlockSpec((C, Cqp), lambda b, h, q: (0, 0), **kw),
            pl.BlockSpec((1, Cqp), lambda b, h, q: (0, 0), **kw),
            pl.BlockSpec((C, Nkv), lambda b, h, q: (0, 0), **kw),
            pl.BlockSpec((1, Nkv), lambda b, h, q: (0, 0), **kw),
            pl.BlockSpec(memory_space=pltpu.MemorySpace.SMEM),     # alpha (scalar path)
        ]

    def run(single_buffer_invariants):
        return pl.pallas_call(
            kernel,
            out_shape=(
                jax.ShapeDtypeStruct((B, HW, C), jnp.float32),
                jax.ShapeDtypeStruct((B, HW, HW), qk_dtype),
            ),
            grid_spec=pltpu.PrefetchScalarGridSpec(
                num_scalar_prefetch=0,
                grid=(B, n_qsplit, n_per),
                in_specs=build_in_specs(single_buffer_invariants),
                out_specs=[
                    pl.BlockSpec((1, tq, C), lambda b, h, q: (b, h * n_per + q, 0)),
                    pl.BlockSpec((1, tq, HW), lambda b, h, q: (b, h * n_per + q, 0)),
                ],
                scratch_shapes=[pltpu.VMEM((HW, Nkv), scr_dtype)],
            ),
            compiler_params=pltpu.CompilerParams(
                dimension_semantics=("parallel", "parallel", "arbitrary"),
                vmem_limit_bytes=vmem_limit,
            ),
        )(x, wq_pad, bq_pad, w_kv, b_kv, alpha_s)

    try:
        out, qk = run(True)
    except Exception:
        # pipeline_mode=Buffered(1) not supported on this jax version; the
        # default double-buffered path is functionally identical.
        out, qk = run(False)

    # (B, HW, C) -> NCHW
    out_nchw = jnp.transpose(out, (0, 2, 1)).reshape(B, C, H, W)
    return out_nchw, qk


def pam_reference(x_nchw, params):
    """Pure-JAX reference mirroring the PyTorch PAM.forward."""
    B, C, H, W = x_nchw.shape
    HW = H * W
    wq, bq, wk, bk, wv, bv, alpha = params

    def conv1x1(x, w, b):
        o = jnp.einsum('bchw,oc->bohw', x, w.reshape(-1, C)) + b[None, :, None, None]
        return o.reshape(B, -1, HW)

    Q = jnp.transpose(conv1x1(x_nchw, wq, bq), (0, 2, 1))    # (B, HW, Cq)
    K = conv1x1(x_nchw, wk, bk)                               # (B, Cq, HW)
    QK = jnp.einsum('bic,bcj->bij', Q, K)                     # (B, HW, HW)
    attn = jax.nn.softmax(QK, axis=-1)
    V = conv1x1(x_nchw, wv, bv)                               # (B, C, HW)
    QKV = jnp.einsum('bcj,bij->bci', V, attn).reshape(B, C, H, W)
    out = alpha * QKV + x_nchw
    return out, QK


if __name__ == "__main__":
    key = jax.random.PRNGKey(0)
    B, C, H, W = 2, 32, 8, 8          # C must be divisible by 8 (PAM uses C//8)
    Cq = C // 8

    keys = jax.random.split(key, 8)
    x = jax.random.normal(keys[0], (B, C, H, W), dtype=jnp.float32)
    wq = jax.random.normal(keys[1], (Cq, C, 1, 1), dtype=jnp.float32) * 0.1
    bq = jax.random.normal(keys[2], (Cq,), dtype=jnp.float32) * 0.1
    wk = jax.random.normal(keys[3], (Cq, C, 1, 1), dtype=jnp.float32) * 0.1
    bk = jax.random.normal(keys[4], (Cq,), dtype=jnp.float32) * 0.1
    wv = jax.random.normal(keys[5], (C, C, 1, 1), dtype=jnp.float32) * 0.1
    bv = jax.random.normal(keys[6], (C,), dtype=jnp.float32) * 0.1

    # 1) ScalarMult initializes k = 0.0 exactly as PyTorch: out == x, QK strict.
    alpha0 = jnp.array(0.0, dtype=jnp.float32)
    params0 = (wq, bq, wk, bk, wv, bv, alpha0)
    out0, qk0 = pam_forward(x, params0, tq=32)          # 2 query tiles per batch
    out0 = jax.block_until_ready(out0)
    qk0 = jax.block_until_ready(qk0)
    ref_out0, ref_qk0 = pam_reference(x, params0)
    assert out0.shape == (B, C, H, W) and qk0.shape == (B, H * W, H * W)
    assert jnp.allclose(out0, ref_out0, atol=1e-4, rtol=1e-4)
    assert jnp.allclose(qk0, ref_qk0, atol=1e-4, rtol=1e-4)

    # 2) Nonzero alpha exercises softmax + deferred normalization (exact divide).
    alpha1 = jnp.array(0.7, dtype=jnp.float32)
    params1 = (wq, bq, wk, bk, wv, bv, alpha1)
    out1, qk1 = pam_forward(x, params1, tq=32)
    out1 = jax.block_until_ready(out1)
    ref_out1, ref_qk1 = pam_reference(x, params1)
    assert jnp.allclose(qk1, ref_qk1, atol=1e-4, rtol=1e-4)
    assert jnp.allclose(out1, ref_out1, atol=1e-3, rtol=1e-3)

    # 3) VMEM-aware automatic q-tile selection path.
    out3, qk3 = pam_forward(x, params1)
    out3 = jax.block_until_ready(out3)
    assert jnp.allclose(out3, ref_out1, atol=1e-3, rtol=1e-3)
    assert jnp.allclose(qk3, ref_qk1, atol=1e-4, rtol=1e-4)

    # 4) bf16 fast path (bf16 MXU matmuls + bf16 K|V scratch + bf16 QK
    #    writeback) with a megacore q-split grid (B, 2, n_qt/2).
    out2, qk2 = pam_forward(x, params1, tq=32, use_bf16=True,
                            qk_dtype=jnp.bfloat16, n_qsplit=2)
    out2 = jax.block_until_ready(out2)
    assert qk2.dtype == jnp.bfloat16
    assert jnp.allclose(out2, ref_out1, atol=5e-2, rtol=5e-2)
    assert jnp.allclose(qk2.astype(jnp.float32), ref_qk1, atol=5e-2, rtol=5e-2)

    print("KERNEL_OK")
</pallas_src>

<mosaic_0001>
module attributes {stable_mosaic.version = 11 : i64} {
  func.func @kernel(%arg0: i32, %arg1: i32, %arg2: i32, %arg3: memref<1x64x32xf32, #tpu.memory_space<vmem>>, %arg4: memref<32x128xf32, #tpu.memory_space<vmem>>, %arg5: memref<1x128xf32, #tpu.memory_space<vmem>>, %arg6: memref<32x160xf32, #tpu.memory_space<vmem>>, %arg7: memref<1x160xf32, #tpu.memory_space<vmem>>, %arg8: memref<1xf32, #tpu.memory_space<smem>>, %arg9: memref<1x32x32xf32, #tpu.memory_space<vmem>>, %arg10: memref<1x32x64xf32, #tpu.memory_space<vmem>>, %arg11: memref<64x160xf32, #tpu.memory_space<vmem>>) attributes {dimension_semantics = [#tpu.dimension_semantics<parallel>, #tpu.dimension_semantics<parallel>, #tpu.dimension_semantics<arbitrary>], iteration_bounds = array<i64: 2, 1, 2>, scalar_prefetch = 0 : i64, scratch_operands = 1 : i64, tpu.core_type = #tpu.core_type<tc>, window_params = [{pipeline_mode = #tpu.pipeline_mode<synchronous>, transform_indices = @transform_0, window_bounds = array<i64: 1, 64, 32>}, {pipeline_mode = #tpu.pipeline_mode<synchronous>, transform_indices = @transform_1, window_bounds = array<i64: 32, 128>}, {pipeline_mode = #tpu.pipeline_mode<synchronous>, transform_indices = @transform_2, window_bounds = array<i64: 1, 128>}, {pipeline_mode = #tpu.pipeline_mode<synchronous>, transform_indices = @transform_3, window_bounds = array<i64: 32, 160>}, {pipeline_mode = #tpu.pipeline_mode<synchronous>, transform_indices = @transform_4, window_bounds = array<i64: 1, 160>}, {transform_indices = @transform_5, window_bounds = array<i64: 1>}, {transform_indices = @transform_6, window_bounds = array<i64: 1, 32, 32>}, {transform_indices = @transform_7, window_bounds = array<i64: 1, 32, 64>}]} {
    %c0_i32 = arith.constant 0 : i32
    %0 = arith.cmpi eq, %arg2, %c0_i32 : i32
    %1 = arith.extui %0 : i1 to i32
    %c0_i32_0 = arith.constant 0 : i32
    %c0_i32_1 = arith.constant 0 : i32
    %2 = arith.cmpi ne, %1, %c0_i32_1 : i32
    scf.if %2 {
      %41 = arith.index_cast %c0_i32_0 : i32 to index
      %c0_24 = arith.constant 0 : index
      %c0_25 = arith.constant 0 : index
      %42 = vector.load %arg3[%41, %c0_24, %c0_25] : memref<1x64x32xf32, #tpu.memory_space<vmem>>, vector<1x64x32xf32>
      %43 = vector.shape_cast %42 : vector<1x64x32xf32> to vector<64x32xf32>
      %c0_26 = arith.constant 0 : index
      %c0_27 = arith.constant 0 : index
      %44 = vector.load %arg6[%c0_26, %c0_27] : memref<32x160xf32, #tpu.memory_space<vmem>>, vector<32x160xf32>
      %cst_28 = arith.constant dense<0.000000e+00> : vector<64x160xf32>
      %45 = tpu.matmul %43, %44, %cst_28 {dimension_numbers = #tpu.dot_dimension_numbers<[1], [0], [0], [1], [0, 0, 1, 1], [], []>} : vector<64x32xf32>, vector<32x160xf32>, vector<64x160xf32> -> vector<64x160xf32>
      %c0_29 = arith.constant 0 : index
      %c0_30 = arith.constant 0 : index
      %46 = vector.load %arg7[%c0_29, %c0_30] : memref<1x160xf32, #tpu.memory_space<vmem>>, vector<1x160xf32>
      %47 = vector.broadcast %46 : vector<1x160xf32> to vector<64x160xf32>
      %48 = arith.addf %45, %47 : vector<64x160xf32>
      %c0_31 = arith.constant 0 : index
      %c0_32 = arith.constant 0 : index
      %49 = vector.load %arg11[%c0_31, %c0_32] : memref<64x160xf32, #tpu.memory_space<vmem>>, vector<64x160xf32>
      tpu.vector_store %arg11[%c0_31, %c0_32], %48 {strides = array<i32>} : memref<64x160xf32, #tpu.memory_space<vmem>>, vector<64x160xf32>,
    } else {
    }
    %c2_i32 = arith.constant 2 : i32
    %3 = arith.muli %arg1, %c2_i32 : i32
    %4 = arith.addi %3, %arg2 : i32
    %c32_i32 = arith.constant 32 : i32
    %5 = arith.muli %4, %c32_i32 : i32
    %6 = tpu.assume_multiple %5, 32 : i32
    %c0_i32_2 = arith.constant 0 : i32
    %c0_i32_3 = arith.constant 0 : i32
    %c0_i32_4 = arith.constant 0 : i32
    %7 = tpu.memref_slice %arg3[%c0_i32_2, %c0_i32_3, %c0_i32_4] : memref<1x64x32xf32, #tpu.memory_space<vmem>> -> memref<1x64x32xf32, #tpu.memory_space<vmem>>
    %8 = tpu.memref_squeeze %7 : memref<1x64x32xf32, #tpu.memory_space<vmem>> -> memref<64x32xf32, #tpu.memory_space<vmem>>
    %9 = arith.index_cast %6 : i32 to index
    %c0 = arith.constant 0 : index
    %10 = vector.load %8[%9, %c0] : memref<64x32xf32, #tpu.memory_space<vmem>>, vector<32x32xf32>
    %c0_5 = arith.constant 0 : index
    %c0_6 = arith.constant 0 : index
    %11 = vector.load %arg4[%c0_5, %c0_6] : memref<32x128xf32, #tpu.memory_space<vmem>>, vector<32x128xf32>
    %cst = arith.constant dense<0.000000e+00> : vector<32x128xf32>
    %12 = tpu.matmul %10, %11, %cst {dimension_numbers = #tpu.dot_dimension_numbers<[1], [0], [0], [1], [0, 0, 1, 1], [], []>} : vector<32x32xf32>, vector<32x128xf32>, vector<32x128xf32> -> vector<32x128xf32>
    %c0_7 = arith.constant 0 : index
    %c0_8 = arith.constant 0 : index
    %13 = vector.load %arg5[%c0_7, %c0_8] : memref<1x128xf32, #tpu.memory_space<vmem>>, vector<1x128xf32>
    %14 = vector.broadcast %13 : vector<1x128xf32> to vector<32x128xf32>
    %15 = arith.addf %12, %14 : vector<32x128xf32>
    %c0_9 = arith.constant 0 : index
    %c0_10 = arith.constant 0 : index
    %16 = vector.load %arg11[%c0_9, %c0_10] : memref<64x160xf32, #tpu.memory_space<vmem>>, vector<64x128xf32>
    %c0_11 = arith.constant 0 : index
    %c128 = arith.constant 128 : index
    %17 = vector.load %arg11[%c0_11, %c128] : memref<64x160xf32, #tpu.memory_space<vmem>>, vector<64x32xf32>
    %cst_12 = arith.constant dense<0.000000e+00> : vector<32x64xf32>
    %18 = tpu.matmul %15, %16, %cst_12 {dimension_numbers = #tpu.dot_dimension_numbers<[1], [1], [0], [0], [0, 0, 1, 0], [], []>} : vector<32x128xf32>, vector<64x128xf32>, vector<32x64xf32> -> vector<32x64xf32>
    %c0_13 = arith.constant 0 : index
    %c0_14 = arith.constant 0 : index
    %c0_15 = arith.constant 0 : index
    %19 = vector.load %arg10[%c0_13, %c0_14, %c0_15] : memref<1x32x64xf32, #tpu.memory_space<vmem>>, vector<1x32x64xf32>
    %20 = vector.shape_cast %19 : vector<1x32x64xf32> to vector<32x64xf32>
    %21 = vector.shape_cast %18 : vector<32x64xf32> to vector<1x32x64xf32>
    tpu.vector_store %arg10[%c0_13, %c0_14, %c0_15], %21 {strides = array<i32>} : memref<1x32x64xf32, #tpu.memory_space<vmem>>, vector<1x32x64xf32>,
    %cst_16 = arith.constant dense<0xFF800000> : vector<32xf32>
    %22 = vector.multi_reduction <maximumf>, %18, %cst_16 [1] : vector<32x64xf32> to vector<32xf32>
    %23 = vector.shape_cast %22 : vector<32xf32> to vector<32x1xf32>
    %24 = vector.broadcast %23 : vector<32x1xf32> to vector<32x64xf32>
    %25 = arith.subf %18, %24 : vector<32x64xf32>
    %26 = math.exp %25 : vector<32x64xf32>
    %cst_17 = arith.constant dense<0.000000e+00> : vector<32xf32>
    %27 = vector.multi_reduction <add>, %26, %cst_17 [1] : vector<32x64xf32> to vector<32xf32>
    %28 = vector.shape_cast %27 : vector<32xf32> to vector<32x1xf32>
    %cst_18 = arith.constant dense<0.000000e+00> : vector<32x32xf32>
    %29 = tpu.matmul %26, %17, %cst_18 {dimension_numbers = #tpu.dot_dimension_numbers<[1], [0], [0], [1], [0, 0, 1, 1], [], []>} : vector<32x64xf32>, vector<64x32xf32>, vector<32x32xf32> -> vector<32x32xf32>
    %cst_19 = arith.constant 1.000000e+00 : f32
    %30 = vector.broadcast %cst_19 : f32 to vector<32x1xf32>
    %31 = arith.divf %30, %28 : vector<32x1xf32>
    %c0_20 = arith.constant 0 : index
    %32 = memref.load %arg8[%c0_20] : memref<1xf32, #tpu.memory_space<smem>>
    %33 = vector.broadcast %31 : vector<32x1xf32> to vector<32x32xf32>
    %34 = arith.mulf %29, %33 : vector<32x32xf32>
    %35 = vector.broadcast %32 : f32 to vector<32x32xf32>
    %36 = arith.mulf %35, %34 : vector<32x32xf32>
    %37 = arith.addf %36, %10 : vector<32x32xf32>
    %c0_21 = arith.constant 0 : index
    %c0_22 = arith.constant 0 : index
    %c0_23 = arith.constant 0 : index
    %38 = vector.load %arg9[%c0_21, %c0_22, %c0_23] : memref<1x32x32xf32, #tpu.memory_space<vmem>>, vector<1x32x32xf32>
    %39 = vector.shape_cast %38 : vector<1x32x32xf32> to vector<32x32xf32>
    %40 = vector.shape_cast %37 : vector<32x32xf32> to vector<1x32x32xf32>
    tpu.vector_store %arg9[%c0_21, %c0_22, %c0_23], %40 {strides = array<i32>} : memref<1x32x32xf32, #tpu.memory_space<vmem>>, vector<1x32x32xf32>,
    return
  }
  func.func @transform_0(%arg0: i32, %arg1: i32, %arg2: i32) -> (i32, i32, i32) {
    %c0_i32 = arith.constant 0 : i32
    %c0_i32_0 = arith.constant 0 : i32
    %c0_i32_1 = arith.constant 0 : i32
    return %arg0, %c0_i32, %c0_i32_0 : i32, i32, i32
  }
  func.func @transform_1(%arg0: i32, %arg1: i32, %arg2: i32) -> (i32, i32) {
    %c0_i32 = arith.constant 0 : i32
    %c0_i32_0 = arith.constant 0 : i32
    %c0_i32_1 = arith.constant 0 : i32
    return %c0_i32, %c0_i32_0 : i32, i32
  }
  func.func @transform_2(%arg0: i32, %arg1: i32, %arg2: i32) -> (i32, i32) {
    %c0_i32 = arith.constant 0 : i32
    %c0_i32_0 = arith.constant 0 : i32
    %c0_i32_1 = arith.constant 0 : i32
    return %c0_i32, %c0_i32_0 : i32, i32
  }
  func.func @transform_3(%arg0: i32, %arg1: i32, %arg2: i32) -> (i32, i32) {
    %c0_i32 = arith.constant 0 : i32
    %c0_i32_0 = arith.constant 0 : i32
    %c0_i32_1 = arith.constant 0 : i32
    return %c0_i32, %c0_i32_0 : i32, i32
  }
  func.func @transform_4(%arg0: i32, %arg1: i32, %arg2: i32) -> (i32, i32) {
    %c0_i32 = arith.constant 0 : i32
    %c0_i32_0 = arith.constant 0 : i32
    %c0_i32_1 = arith.constant 0 : i32
    return %c0_i32, %c0_i32_0 : i32, i32
  }
  func.func @transform_5(%arg0: i32, %arg1: i32, %arg2: i32) -> i32 {
    %c0_i32 = arith.constant 0 : i32
    %c0_i32_0 = arith.constant 0 : i32
    return %c0_i32 : i32
  }
  func.func @transform_6(%arg0: i32, %arg1: i32, %arg2: i32) -> (i32, i32, i32) {
    %c2_i32 = arith.constant 2 : i32
    %0 = arith.muli %arg1, %c2_i32 : i32
    %1 = arith.addi %0, %arg2 : i32
    %c0_i32 = arith.constant 0 : i32
    %c0_i32_0 = arith.constant 0 : i32
    return %arg0, %1, %c0_i32 : i32, i32, i32
  }
  func.func @transform_7(%arg0: i32, %arg1: i32, %arg2: i32) -> (i32, i32, i32) {
    %c2_i32 = arith.constant 2 : i32
    %0 = arith.muli %arg1, %c2_i32 : i32
    %1 = arith.addi %0, %arg2 : i32
    %c0_i32 = arith.constant 0 : i32
    %c0_i32_0 = arith.constant 0 : i32
    return %arg0, %1, %c0_i32 : i32, i32, i32
  }
}

module attributes {stable_mosaic.version = 11 : i64} {
  func.func @kernel(%arg0: i32, %arg1: i32, %arg2: i32, %arg3: memref<1x64x32xf32, #tpu.memory_space<vmem>>, %arg4: memref<32x128xf32, #tpu.memory_space<vmem>>, %arg5: memref<1x128xf32, #tpu.memory_space<vmem>>, %arg6: memref<32x160xf32, #tpu.memory_space<vmem>>, %arg7: memref<1x160xf32, #tpu.memory_space<vmem>>, %arg8: memref<1xf32, #tpu.memory_space<smem>>, %arg9: memref<1x32x32xf32, #tpu.memory_space<vmem>>, %arg10: memref<1x32x64xf32, #tpu.memory_space<vmem>>, %arg11: memref<64x160xf32, #tpu.memory_space<vmem>>) attributes {dimension_semantics = [#tpu.dimension_semantics<parallel>, #tpu.dimension_semantics<parallel>, #tpu.dimension_semantics<arbitrary>], iteration_bounds = array<i64: 2, 1, 2>, scalar_prefetch = 0 : i64, scratch_operands = 1 : i64, tpu.core_type = #tpu.core_type<tc>, window_params = [{transform_indices = @transform_0, window_bounds = array<i64: 1, 64, 32>}, {pipeline_mode = #tpu.pipeline_mode<synchronous>, transform_indices = @transform_1, window_bounds = array<i64: 32, 128>}, {pipeline_mode = #tpu.pipeline_mode<synchronous>, transform_indices = @transform_2, window_bounds = array<i64: 1, 128>}, {pipeline_mode = #tpu.pipeline_mode<synchronous>, transform_indices = @transform_3, window_bounds = array<i64: 32, 160>}, {pipeline_mode = #tpu.pipeline_mode<synchronous>, transform_indices = @transform_4, window_bounds = array<i64: 1, 160>}, {transform_indices = @transform_5, window_bounds = array<i64: 1>}, {transform_indices = @transform_6, window_bounds = array<i64: 1, 32, 32>}, {transform_indices = @transform_7, window_bounds = array<i64: 1, 32, 64>}]} {
    %c0_i32 = arith.constant 0 : i32
    %0 = arith.cmpi eq, %arg2, %c0_i32 : i32
    %1 = arith.extui %0 : i1 to i32
    %c0_i32_0 = arith.constant 0 : i32
    %c0_i32_1 = arith.constant 0 : i32
    %2 = arith.cmpi ne, %1, %c0_i32_1 : i32
    scf.if %2 {
      %41 = arith.index_cast %c0_i32_0 : i32 to index
      %c0_24 = arith.constant 0 : index
      %c0_25 = arith.constant 0 : index
      %42 = vector.load %arg3[%41, %c0_24, %c0_25] : memref<1x64x32xf32, #tpu.memory_space<vmem>>, vector<1x64x32xf32>
      %43 = vector.shape_cast %42 : vector<1x64x32xf32> to vector<64x32xf32>
      %c0_26 = arith.constant 0 : index
      %c0_27 = arith.constant 0 : index
      %44 = vector.load %arg6[%c0_26, %c0_27] : memref<32x160xf32, #tpu.memory_space<vmem>>, vector<32x160xf32>
      %cst_28 = arith.constant dense<0.000000e+00> : vector<64x160xf32>
      %45 = tpu.matmul %43, %44, %cst_28 {dimension_numbers = #tpu.dot_dimension_numbers<[1], [0], [0], [1], [0, 0, 1, 1], [], []>} : vector<64x32xf32>, vector<32x160xf32>, vector<64x160xf32> -> vector<64x160xf32>
      %c0_29 = arith.constant 0 : index
      %c0_30 = arith.constant 0 : index
      %46 = vector.load %arg7[%c0_29, %c0_30] : memref<1x160xf32, #tpu.memory_space<vmem>>, vector<1x160xf32>
      %47 = vector.broadcast %46 : vector<1x160xf32> to vector<64x160xf32>
      %48 = arith.addf %45, %47 : vector<64x160xf32>
      %c0_31 = arith.constant 0 : index
      %c0_32 = arith.constant 0 : index
      %49 = vector.load %arg11[%c0_31, %c0_32] : memref<64x160xf32, #tpu.memory_space<vmem>>, vector<64x160xf32>
      tpu.vector_store %arg11[%c0_31, %c0_32], %48 {strides = array<i32>} : memref<64x160xf32, #tpu.memory_space<vmem>>, vector<64x160xf32>,
    } else {
    }
    %c2_i32 = arith.constant 2 : i32
    %3 = arith.muli %arg1, %c2_i32 : i32
    %4 = arith.addi %3, %arg2 : i32
    %c32_i32 = arith.constant 32 : i32
    %5 = arith.muli %4, %c32_i32 : i32
    %6 = tpu.assume_multiple %5, 32 : i32
    %c0_i32_2 = arith.constant 0 : i32
    %c0_i32_3 = arith.constant 0 : i32
    %c0_i32_4 = arith.constant 0 : i32
    %7 = tpu.memref_slice %arg3[%c0_i32_2, %c0_i32_3, %c0_i32_4] : memref<1x64x32xf32, #tpu.memory_space<vmem>> -> memref<1x64x32xf32, #tpu.memory_space<vmem>>
    %8 = tpu.memref_squeeze %7 : memref<1x64x32xf32, #tpu.memory_space<vmem>> -> memref<64x32xf32, #tpu.memory_space<vmem>>
    %9 = arith.index_cast %6 : i32 to index
    %c0 = arith.constant 0 : index
    %10 = vector.load %8[%9, %c0] : memref<64x32xf32, #tpu.memory_space<vmem>>, vector<32x32xf32>
    %c0_5 = arith.constant 0 : index
    %c0_6 = arith.constant 0 : index
    %11 = vector.load %arg4[%c0_5, %c0_6] : memref<32x128xf32, #tpu.memory_space<vmem>>, vector<32x128xf32>
    %cst = arith.constant dense<0.000000e+00> : vector<32x128xf32>
    %12 = tpu.matmul %10, %11, %cst {dimension_numbers = #tpu.dot_dimension_numbers<[1], [0], [0], [1], [0, 0, 1, 1], [], []>} : vector<32x32xf32>, vector<32x128xf32>, vector<32x128xf32> -> vector<32x128xf32>
    %c0_7 = arith.constant 0 : index
    %c0_8 = arith.constant 0 : index
    %13 = vector.load %arg5[%c0_7, %c0_8] : memref<1x128xf32, #tpu.memory_space<vmem>>, vector<1x128xf32>
    %14 = vector.broadcast %13 : vector<1x128xf32> to vector<32x128xf32>
    %15 = arith.addf %12, %14 : vector<32x128xf32>
    %c0_9 = arith.constant 0 : index
    %c0_10 = arith.constant 0 : index
    %16 = vector.load %arg11[%c0_9, %c0_10] : memref<64x160xf32, #tpu.memory_space<vmem>>, vector<64x128xf32>
    %c0_11 = arith.constant 0 : index
    %c128 = arith.constant 128 : index
    %17 = vector.load %arg11[%c0_11, %c128] : memref<64x160xf32, #tpu.memory_space<vmem>>, vector<64x32xf32>
    %cst_12 = arith.constant dense<0.000000e+00> : vector<32x64xf32>
    %18 = tpu.matmul %15, %16, %cst_12 {dimension_numbers = #tpu.dot_dimension_numbers<[1], [1], [0], [0], [0, 0, 1, 0], [], []>} : vector<32x128xf32>, vector<64x128xf32>, vector<32x64xf32> -> vector<32x64xf32>
    %c0_13 = arith.constant 0 : index
    %c0_14 = arith.constant 0 : index
    %c0_15 = arith.constant 0 : index
    %19 = vector.load %arg10[%c0_13, %c0_14, %c0_15] : memref<1x32x64xf32, #tpu.memory_space<vmem>>, vector<1x32x64xf32>
    %20 = vector.shape_cast %19 : vector<1x32x64xf32> to vector<32x64xf32>
    %21 = vector.shape_cast %18 : vector<32x64xf32> to vector<1x32x64xf32>
    tpu.vector_store %arg10[%c0_13, %c0_14, %c0_15], %21 {strides = array<i32>} : memref<1x32x64xf32, #tpu.memory_space<vmem>>, vector<1x32x64xf32>,
    %cst_16 = arith.constant dense<0xFF800000> : vector<32xf32>
    %22 = vector.multi_reduction <maximumf>, %18, %cst_16 [1] : vector<32x64xf32> to vector<32xf32>
    %23 = vector.shape_cast %22 : vector<32xf32> to vector<32x1xf32>
    %24 = vector.broadcast %23 : vector<32x1xf32> to vector<32x64xf32>
    %25 = arith.subf %18, %24 : vector<32x64xf32>
    %26 = math.exp %25 : vector<32x64xf32>
    %cst_17 = arith.constant dense<0.000000e+00> : vector<32xf32>
    %27 = vector.multi_reduction <add>, %26, %cst_17 [1] : vector<32x64xf32> to vector<32xf32>
    %28 = vector.shape_cast %27 : vector<32xf32> to vector<32x1xf32>
    %cst_18 = arith.constant dense<0.000000e+00> : vector<32x32xf32>
    %29 = tpu.matmul %26, %17, %cst_18 {dimension_numbers = #tpu.dot_dimension_numbers<[1], [0], [0], [1], [0, 0, 1, 1], [], []>} : vector<32x64xf32>, vector<64x32xf32>, vector<32x32xf32> -> vector<32x32xf32>
    %cst_19 = arith.constant 1.000000e+00 : f32
    %30 = vector.broadcast %cst_19 : f32 to vector<32x1xf32>
    %31 = arith.divf %30, %28 : vector<32x1xf32>
    %c0_20 = arith.constant 0 : index
    %32 = memref.load %arg8[%c0_20] : memref<1xf32, #tpu.memory_space<smem>>
    %33 = vector.broadcast %31 : vector<32x1xf32> to vector<32x32xf32>
    %34 = arith.mulf %29, %33 : vector<32x32xf32>
    %35 = vector.broadcast %32 : f32 to vector<32x32xf32>
    %36 = arith.mulf %35, %34 : vector<32x32xf32>
    %37 = arith.addf %36, %10 : vector<32x32xf32>
    %c0_21 = arith.constant 0 : index
    %c0_22 = arith.constant 0 : index
    %c0_23 = arith.constant 0 : index
    %38 = vector.load %arg9[%c0_21, %c0_22, %c0_23] : memref<1x32x32xf32, #tpu.memory_space<vmem>>, vector<1x32x32xf32>
    %39 = vector.shape_cast %38 : vector<1x32x32xf32> to vector<32x32xf32>
    %40 = vector.shape_cast %37 : vector<32x32xf32> to vector<1x32x32xf32>
    tpu.vector_store %arg9[%c0_21, %c0_22, %c0_23], %40 {strides = array<i32>} : memref<1x32x32xf32, #tpu.memory_space<vmem>>, vector<1x32x32xf32>,
    return
  }
  func.func @transform_0(%arg0: i32, %arg1: i32, %arg2: i32) -> (i32, i32, i32) {
    %c0_i32 = arith.constant 0 : i32
    %c0_i32_0 = arith.constant 0 : i32
    %c0_i32_1 = arith.constant 0 : i32
    return %arg0, %c0_i32, %c0_i32_0 : i32, i32, i32
  }
  func.func @transform_1(%arg0: i32, %arg1: i32, %arg2: i32) -> (i32, i32) {
    %c0_i32 = arith.constant 0 : i32
    %c0_i32_0 = arith.constant 0 : i32
    %c0_i32_1 = arith.constant 0 : i32
    return %c0_i32, %c0_i32_0 : i32, i32
  }
  func.func @transform_2(%arg0: i32, %arg1: i32, %arg2: i32) -> (i32, i32) {
    %c0_i32 = arith.constant 0 : i32
    %c0_i32_0 = arith.constant 0 : i32
    %c0_i32_1 = arith.constant 0 : i32
    return %c0_i32, %c0_i32_0 : i32, i32
  }
  func.func @transform_3(%arg0: i32, %arg1: i32, %arg2: i32) -> (i32, i32) {
    %c0_i32 = arith.constant 0 : i32
    %c0_i32_0 = arith.constant 0 : i32
    %c0_i32_1 = arith.constant 0 : i32
    return %c0_i32, %c0_i32_0 : i32, i32
  }
  func.func @transform_4(%arg0: i32, %arg1: i32, %arg2: i32) -> (i32, i32) {
    %c0_i32 = arith.constant 0 : i32
    %c0_i32_0 = arith.constant 0 : i32
    %c0_i32_1 = arith.constant 0 : i32
    return %c0_i32, %c0_i32_0 : i32, i32
  }
  func.func @transform_5(%arg0: i32, %arg1: i32, %arg2: i32) -> i32 {
    %c0_i32 = arith.constant 0 : i32
    %c0_i32_0 = arith.constant 0 : i32
    return %c0_i32 : i32
  }
  func.func @transform_6(%arg0: i32, %arg1: i32, %arg2: i32) -> (i32, i32, i32) {
    %c2_i32 = arith.constant 2 : i32
    %0 = arith.muli %arg1, %c2_i32 : i32
    %1 = arith.addi %0, %arg2 : i32
    %c0_i32 = arith.constant 0 : i32
    %c0_i32_0 = arith.constant 0 : i32
    return %arg0, %1, %c0_i32 : i32, i32, i32
  }
  func.func @transform_7(%arg0: i32, %arg1: i32, %arg2: i32) -> (i32, i32, i32) {
    %c2_i32 = arith.constant 2 : i32
    %0 = arith.muli %arg1, %c2_i32 : i32
    %1 = arith.addi %0, %arg2 : i32
    %c0_i32 = arith.constant 0 : i32
    %c0_i32_0 = arith.constant 0 : i32
    return %arg0, %1, %c0_i32 : i32, i32, i32
  }
}

</mosaic_0001>

<llo_original>
// kernel: tpu_custom_call.1
$region0: #{tpu_custom_call.1}
  #allocation0 [shape = 'u32[]', space=smem, size = 0x4, offset = 0x4, fixed_abs, tag = 'smem constant byte address 0x4 - core index']
  #allocation1 [shape = 'u32[72,128]{1,0:T(1,128)}', space=vmem, size = 0x9000, scoped, tag = 'internal scratch']
  #allocation2 [shape = 'f32[64,160]{1,0:T(8,128)}', space=vmem, size = 0x10000, scoped, tag = 'scratch operand']
  #allocation3 [shape = 'f32[1]{0:T(128)S(6)}', space=smem, size = 0x200, scoped, tag = 'scoped memory for tpu_custom_call.1']
  %s0 = inlined_call_operand.vmem [shape: f32[2,64,32], index: 0, kind: input, shape index: {}]
  %s1 = inlined_call_operand.vmem [shape: f32[32,128], index: 1, kind: input, shape index: {}]
  %s2 = inlined_call_operand.vmem [shape: f32[1,128], index: 2, kind: input, shape index: {}]
  %s3 = inlined_call_operand.vmem [shape: f32[32,160], index: 3, kind: input, shape index: {}]
  %s4 = inlined_call_operand.vmem [shape: f32[1,160], index: 4, kind: input, shape index: {}]
  %s5 = inlined_call_operand.<no memory space> [shape: f32[1], index: 5, kind: input, shape index: {}]
  %s6 = inlined_call_operand.vmem [shape: f32[2,64,32], index: 6, kind: output, shape index: {0}]
  %s7 = inlined_call_operand.hbm [shape: f32[2,64,64], index: 7, kind: output, shape index: {1}]
  %8 = xla_tuple %s6, %s7
  %s9 = sld [smem:[#allocation0]]
  $region69: #{tpu_custom_call.1} parent=0
    _
  %s11 = ssub.s32 1, %s9
  %s12 = scalar_select 0, %s11, %s9
  %13 = sst [smem:[#allocation3]] %s5
  $region1: #{tpu_custom_call.1} parent=0
    #allocation4 [shape = 'u8[32768]{0}', space=vmem, size = 0x8000, scoped, tag = 'output window, operand 1']
    #allocation5 [shape = 's32[2]{0}', space=sflag, size = 0x8, scoped, tag = 'scoped memory for tpu_custom_call.1']
    %14 = vsyncpa [#allocation5], 0
    %s15 = scalar_lea.sflag [#allocation5], 1
    %16 = vsyncpa %s15, 0
    loop: start=0, step=1, limit=6
    $region2: #{tpu_custom_call.1} parent=1 // loop_pre_header
      _
    $region3: #{tpu_custom_call.1} parent=1 // loop_header
      %s18 = sphi 0, %s22
      %p19 = scmp.ge.s32.totalorder %s18, 6
      %s25 = sphi 0, %s44
      %s26 = sphi 0, %s40
      %s27 = sphi 0, %s36
      %s28 = sphi 0, %s25
      %s29 = sphi 0, %s26
      %s30 = sphi 0, %s27
      %s31 = sphi 0, %s28
      %s32 = sphi 0, %s29
      %s33 = sphi 0, %s30
      %s47 = sphi 0, %s49
      %s50 = sphi 0, %s47
      %s51 = sphi 0, %s50
      %s67 = sphi 0, %s51
      %s71 = sphi 0, %s71
      %s73 = sphi 0, %s71
      %s74 = sphi 0, %s73
      %s88 = sphi 0, %s74
      %s92 = sphi 0, %s92
      %s94 = sphi 0, %s92
      %s95 = sphi 0, %s94
      %s109 = sphi 0, %s95
      %s113 = sphi 0, %s113
      %s115 = sphi 0, %s113
      %s116 = sphi 0, %s115
      %s130 = sphi 0, %s116
      %s134 = sphi 0, %s134
      %s136 = sphi 0, %s134
      %s137 = sphi 0, %s136
      %s151 = sphi 0, %s137
      %s155 = sphi 0, %s155
      %s157 = sphi 0, %s155
      %s158 = sphi 0, %s157
      %s172 = sphi 0, %s158
      %s184 = sphi 0, %s186
      %s187 = sphi 0, %s184
      %s188 = sphi 0, %s187
      %s204 = sphi 0, %s188
      %s216 = sphi 0, %s218
      %s219 = sphi 0, %s216
      %s220 = sphi 0, %s219
      %s236 = sphi 0, %s220
    $region4: #{tpu_custom_call.1} parent=1 // loop_header_branch
      %21 = sbr.rel (%p19) target = $region8
    $region5: #{tpu_custom_call.1} parent=1 // loop_body
      %s23 = ssub.s32 %s18, 1
      %s24 = ssub.s32 %s18, 2
      %s34 = sadd.s32 1, %s27
      %p35 = scmp.ge.s32.totalorder %s34, 2
      %s36 = scalar_select %p35, 0, %s34
      %s37 = sadd.s32 1, %s26
      %s38 = scalar_select %p35, %s37, %s26
      %p39 = scmp.ge.s32.totalorder %s38, 1
      %s40 = scalar_select %p39, 0, %s38
      %s41 = sadd.s32 1, %s25
      %s42 = scalar_select %p39, %s41, %s25
      %p43 = scmp.ge.s32.totalorder %s42, 2
      %s44 = scalar_select %p43, 0, %s42
      %s45 = ssub.s32 %s25, %s44
      %p46 = scmp.eq.s32.totalorder %s45, 0
      %s48 = sadd.s32 %s47, 1
      %s49 = scalar_select %p46, %s47, %s48
      %p52 = pneg %p46
      %p53 = scmp.eq.s32.totalorder %s18, 3
      %p54 = por %p52, %p53
      %p55 = scmp.ne.s32.totalorder %s47, %s50
      %p56 = scmp.eq.s32.totalorder %s18, 0
      %p57 = por %p55, %p56
      %p58 = scmp.ne.s32.totalorder %s47, %s50
      %p59 = scmp.eq.s32.totalorder %s23, 3
      %p60 = por %p58, %p59
      %p61 = scmp.ne.s32.totalorder %s50, %s51
      %p62 = scmp.eq.s32.totalorder %s23, 0
      %p63 = por %p61, %p62
      %p64 = scmp.ne.s32.totalorder %s50, %s51
      %p65 = scmp.eq.s32.totalorder %s24, 3
      %p66 = por %p64, %p65
      %p68 = scmp.ne.s32.totalorder %s51, %s67
      %p69 = scmp.eq.s32.totalorder %s24, 0
      %p70 = por %p68, %p69
      %s72 = sadd.s32 %s71, 1
      %p75 = scmp.eq.s32.totalorder %s18, 3
      %p76 = scmp.ne.s32.totalorder %s71, %s73
      %p77 = scmp.eq.s32.totalorder %s18, 0
      %p78 = por %p76, %p77
      %p79 = scmp.ne.s32.totalorder %s71, %s73
      %p80 = scmp.eq.s32.totalorder %s23, 3
      %p81 = por %p79, %p80
      %p82 = scmp.ne.s32.totalorder %s73, %s74
      %p83 = scmp.eq.s32.totalorder %s23, 0
      %p84 = por %p82, %p83
      %p85 = scmp.ne.s32.totalorder %s73, %s74
      %p86 = scmp.eq.s32.totalorder %s24, 3
      %p87 = por %p85, %p86
      %p89 = scmp.ne.s32.totalorder %s74, %s88
      %p90 = scmp.eq.s32.totalorder %s24, 0
      %p91 = por %p89, %p90
      %s93 = sadd.s32 %s92, 1
      %p96 = scmp.eq.s32.totalorder %s18, 3
      %p97 = scmp.ne.s32.totalorder %s92, %s94
      %p98 = scmp.eq.s32.totalorder %s18, 0
      %p99 = por %p97, %p98
      %p100 = scmp.ne.s32.totalorder %s92, %s94
      %p101 = scmp.eq.s32.totalorder %s23, 3
      %p102 = por %p100, %p101
      %p103 = scmp.ne.s32.totalorder %s94, %s95
      %p104 = scmp.eq.s32.totalorder %s23, 0
      %p105 = por %p103, %p104
      %p106 = scmp.ne.s32.totalorder %s94, %s95
      %p107 = scmp.eq.s32.totalorder %s24, 3
      %p108 = por %p106, %p107
      %p110 = scmp.ne.s32.totalorder %s95, %s109
      %p111 = scmp.eq.s32.totalorder %s24, 0
      %p112 = por %p110, %p111
      %s114 = sadd.s32 %s113, 1
      %p117 = scmp.eq.s32.totalorder %s18, 3
      %p118 = scmp.ne.s32.totalorder %s113, %s115
      %p119 = scmp.eq.s32.totalorder %s18, 0
      %p120 = por %p118, %p119
      %p121 = scmp.ne.s32.totalorder %s113, %s115
      %p122 = scmp.eq.s32.totalorder %s23, 3
      %p123 = por %p121, %p122
      %p124 = scmp.ne.s32.totalorder %s115, %s116
      %p125 = scmp.eq.s32.totalorder %s23, 0
      %p126 = por %p124, %p125
      %p127 = scmp.ne.s32.totalorder %s115, %s116
      %p128 = scmp.eq.s32.totalorder %s24, 3
      %p129 = por %p127, %p128
      %p131 = scmp.ne.s32.totalorder %s116, %s130
      %p132 = scmp.eq.s32.totalorder %s24, 0
      %p133 = por %p131, %p132
      %s135 = sadd.s32 %s134, 1
      %p138 = scmp.eq.s32.totalorder %s18, 3
      %p139 = scmp.ne.s32.totalorder %s134, %s136
      %p140 = scmp.eq.s32.totalorder %s18, 0
      %p141 = por %p139, %p140
      %p142 = scmp.ne.s32.totalorder %s134, %s136
      %p143 = scmp.eq.s32.totalorder %s23, 3
      %p144 = por %p142, %p143
      %p145 = scmp.ne.s32.totalorder %s136, %s137
      %p146 = scmp.eq.s32.totalorder %s23, 0
      %p147 = por %p145, %p146
      %p148 = scmp.ne.s32.totalorder %s136, %s137
      %p149 = scmp.eq.s32.totalorder %s24, 3
      %p150 = por %p148, %p149
      %p152 = scmp.ne.s32.totalorder %s137, %s151
      %p153 = scmp.eq.s32.totalorder %s24, 0
      %p154 = por %p152, %p153
      %s156 = sadd.s32 %s155, 1
      %p159 = scmp.eq.s32.totalorder %s18, 3
      %p160 = scmp.ne.s32.totalorder %s155, %s157
      %p161 = scmp.eq.s32.totalorder %s18, 0
      %p162 = por %p160, %p161
      %p163 = scmp.ne.s32.totalorder %s155, %s157
      %p164 = scmp.eq.s32.totalorder %s23, 3
      %p165 = por %p163, %p164
      %p166 = scmp.ne.s32.totalorder %s157, %s158
      %p167 = scmp.eq.s32.totalorder %s23, 0
      %p168 = por %p166, %p167
      %p169 = scmp.ne.s32.totalorder %s157, %s158
      %p170 = scmp.eq.s32.totalorder %s24, 3
      %p171 = por %p169, %p170
      %p173 = scmp.ne.s32.totalorder %s158, %s172
      %p174 = scmp.eq.s32.totalorder %s24, 0
      %p175 = por %p173, %p174
      %s176 = smul.u32 %s26, 2
      %s177 = sadd.s32 %s176, %s27
      %s178 = smul.u32 %s40, 2
      %s179 = sadd.s32 %s178, %s36
      %s180 = ssub.s32 %s25, %s44
      %s181 = ssub.s32 %s177, %s179
      %s182 = sor.u32 %s180, %s181
      %p183 = scmp.eq.s32.totalorder %s182, 0
      %s185 = sadd.s32 %s184, 1
      %s186 = scalar_select %p183, %s184, %s185
      %p189 = pneg %p183
      %p190 = scmp.eq.s32.totalorder %s18, 3
      %p191 = por %p189, %p190
      %p192 = scmp.ne.s32.totalorder %s184, %s187
      %p193 = scmp.eq.s32.totalorder %s18, 0
      %p194 = por %p192, %p193
      %p195 = scmp.ne.s32.totalorder %s184, %s187
      %p196 = scmp.eq.s32.totalorder %s23, 3
      %p197 = por %p195, %p196
      %p198 = scmp.ne.s32.totalorder %s187, %s188
      %p199 = scmp.eq.s32.totalorder %s23, 0
      %p200 = por %p198, %p199
      %p201 = scmp.ne.s32.totalorder %s187, %s188
      %p202 = scmp.eq.s32.totalorder %s24, 3
      %p203 = por %p201, %p202
      %p205 = scmp.ne.s32.totalorder %s188, %s204
      %p206 = scmp.eq.s32.totalorder %s24, 0
      %p207 = por %p205, %p206
      %s208 = smul.u32 %s26, 2
      %s209 = sadd.s32 %s208, %s27
      %s210 = smul.u32 %s40, 2
      %s211 = sadd.s32 %s210, %s36
      %s212 = ssub.s32 %s25, %s44
      %s213 = ssub.s32 %s209, %s211
      %s214 = sor.u32 %s212, %s213
      %p215 = scmp.eq.s32.totalorder %s214, 0
      %s217 = sadd.s32 %s216, 1
      %s218 = scalar_select %p215, %s216, %s217
      %p221 = pneg %p215
      %p222 = scmp.eq.s32.totalorder %s18, 3
      %p223 = por %p221, %p222
      %p224 = scmp.ne.s32.totalorder %s216, %s219
      %p225 = scmp.eq.s32.totalorder %s18, 0
      %p226 = por %p224, %p225
      %p227 = scmp.ne.s32.totalorder %s216, %s219
      %p228 = scmp.eq.s32.totalorder %s23, 3
      %p229 = por %p227, %p228
      %p230 = scmp.ne.s32.totalorder %s219, %s220
      %p231 = scmp.eq.s32.totalorder %s23, 0
      %p232 = por %p230, %p231
      %p233 = scmp.ne.s32.totalorder %s219, %s220
      %p234 = scmp.eq.s32.totalorder %s24, 3
      %p235 = por %p233, %p234
      %p237 = scmp.ne.s32.totalorder %s220, %s236
      %p238 = scmp.eq.s32.totalorder %s24, 0
      %p239 = por %p237, %p238
      %p240 = scmp.le.s32.totalorder 1, %s18
      %p241 = scmp.lt.s32.totalorder %s18, 5
      %p242 = pnand %p240, %p241
      %p243 = pneg %p242
      // Predicated region
      $region9: #{tpu_custom_call.1} parent=5 // pred_check
        _
      $region10: #{tpu_custom_call.1} parent=5 // pred_check_branch
        %245 = sbr.rel (%p242) target = $region12
      $region11: #{tpu_custom_call.1} parent=5 // pred_region
        %s246 = ssub.s32 %s18, 1
        // Predicated region
        $region13: #{tpu_custom_call.1} parent=11 // pred_check
          %p247 = pneg %p63
        $region14: #{tpu_custom_call.1} parent=11 // pred_check_branch
          %249 = sbr.rel (%p247) target = $region16
        $region15: #{tpu_custom_call.1} parent=11 // pred_region
          %p250 = scmp.lt.s32.totalorder %s28, 1
          %s251 = scalar_select %p250, %s28, 1
          %s252 = smul.addr %s251, 8
          %s253 = smul.addr %s252, 8
          %s254 = scalar_lea.vmem %s0, %s253
        $region16: #{tpu_custom_call.1} parent=11 // pred_fallthru
          _
        // Predicated region
        $region17: #{tpu_custom_call.1} parent=11 // pred_check
          %p255 = pneg %p84
        $region18: #{tpu_custom_call.1} parent=11 // pred_check_branch
          %257 = sbr.rel (%p255) target = $region20
        $region19: #{tpu_custom_call.1} parent=11 // pred_region
          _
        $region20: #{tpu_custom_call.1} parent=11 // pred_fallthru
          _
        // Predicated region
        $region21: #{tpu_custom_call.1} parent=11 // pred_check
          %p258 = pneg %p105
        $region22: #{tpu_custom_call.1} parent=11 // pred_check_branch
          %260 = sbr.rel (%p258) target = $region24
        $region23: #{tpu_custom_call.1} parent=11 // pred_region
          _
        $region24: #{tpu_custom_call.1} parent=11 // pred_fallthru
          _
        // Predicated region
        $region25: #{tpu_custom_call.1} parent=11 // pred_check
          %p261 = pneg %p126
        $region26: #{tpu_custom_call.1} parent=11 // pred_check_branch
          %263 = sbr.rel (%p261) target = $region28
        $region27: #{tpu_custom_call.1} parent=11 // pred_region
          _
        $region28: #{tpu_custom_call.1} parent=11 // pred_fallthru
          _
        // Predicated region
        $region29: #{tpu_custom_call.1} parent=11 // pred_check
          %p264 = pneg %p147
        $region30: #{tpu_custom_call.1} parent=11 // pred_check_branch
          %266 = sbr.rel (%p264) target = $region32
        $region31: #{tpu_custom_call.1} parent=11 // pred_region
          _
        $region32: #{tpu_custom_call.1} parent=11 // pred_fallthru
          _
        // Predicated region
        $region33: #{tpu_custom_call.1} parent=11 // pred_check
          %p267 = pneg %p168
        $region34: #{tpu_custom_call.1} parent=11 // pred_check_branch
          %269 = sbr.rel (%p267) target = $region36
        $region35: #{tpu_custom_call.1} parent=11 // pred_region
          _
        $region36: #{tpu_custom_call.1} parent=11 // pred_fallthru
          _
      $region12: #{tpu_custom_call.1} parent=5 // pred_fallthru
        _
      %p270 = scmp.lt.s32.totalorder %s18, 4
      // Predicated region
      $region37: #{tpu_custom_call.1} parent=5 // pred_check
        %p271 = pneg %p270
      $region38: #{tpu_custom_call.1} parent=5 // pred_check_branch
        %273 = sbr.rel (%p271) target = $region40
      $region39: #{tpu_custom_call.1} parent=5 // pred_region
        _
      $region40: #{tpu_custom_call.1} parent=5 // pred_fallthru
        _
      %p274 = scmp.le.s32.totalorder 1, %s18
      %p275 = scmp.lt.s32.totalorder %s18, 5
      %p276 = pnand %p274, %p275
      %p277 = pneg %p276
      // Predicated region
      $region41: #{tpu_custom_call.1} parent=5 // pred_check
        _
      $region42: #{tpu_custom_call.1} parent=5 // pred_check_branch
        %279 = sbr.rel (%p276) target = $region44
      $region43: #{tpu_custom_call.1} parent=5 // pred_region
        %s280 = ssub.s32 %s18, 1
        %p281 = scmp.lt.s32.totalorder %s28, 1
        %s282 = scalar_select %p281, %s28, 1
        %s283 = smul.addr %s282, 8
        %s284 = smul.addr %s283, 8
        %s285 = scalar_lea.vmem %s0, %s284
        %p286 = pneg %p63
        %p287 = pneg %p60
        %p288 = pneg %p84
        %p289 = pneg %p81
        %p290 = pneg %p105
        %p291 = pneg %p102
        %p292 = pneg %p126
        %p293 = pneg %p123
        %p294 = pneg %p147
        %p295 = pneg %p144
        %p296 = pneg %p168
        %p297 = pneg %p165
        %p298 = pneg %p200
        %p299 = pneg %p197
        %s300 = smul.u32 %s29, 2
        %s301 = sadd.s32 %s300, %s30
        %s302 = smul.u32 4, %s301
        %p303 = scmp.lt.s32.totalorder %s28, 1
        %s304 = scalar_select %p303, %s28, 1
        %p305 = scmp.lt.s32.totalorder %s302, 7
        %s306 = scalar_select %p305, %s302, 7
        %s307 = smul.addr %s304, 8
        %s308 = sadd.s32 %s306, %s307
        %s309 = smul.addr %s308, 8
        %s310 = scalar_lea.vmem %s6, %s309
        %p311 = pneg %p232
        %p312 = pneg %p229
        %s313 = sand.u32 %s219, 1
        %s314 = scalar_lea.sflag [#allocation5], %s313
        %s315 = sand.u32 %s219, 1
        %s316 = smul.addr %s315, 32
        %s317 = scalar_lea.vmem [#allocation4], %s316
        %p318 = scmp.lt.s32.totalorder %s28, 1
        %s319 = scalar_select %p318, %s28, 1
        %s320 = smul.addr %s319, 8
        %s321 = smul.addr %s320, 8
        %s322 = scalar_lea.vmem %s0, %s321
        %s323 = smul.u32 %s29, 2
        %s324 = sadd.s32 %s323, %s30
        %s325 = smul.u32 4, %s324
        %p326 = scmp.lt.s32.totalorder %s28, 1
        %s327 = scalar_select %p326, %s28, 1
        %p328 = scmp.lt.s32.totalorder %s325, 7
        %s329 = scalar_select %p328, %s325, 7
        %s330 = smul.addr %s327, 8
        %s331 = sadd.s32 %s329, %s330
        %s332 = smul.addr %s331, 8
        %s333 = scalar_lea.vmem %s6, %s332
        %s334 = smul.u32 %s29, 2
        %s335 = sadd.s32 %s334, %s30
        %s336 = smul.u32 4, %s335
        %s337 = smul.u32 %s29, 2
        %s338 = sadd.s32 %s337, %s30
        %s339 = smul.u32 4, %s338
        %p340 = scmp.eq.s32.totalorder %s30, 0
        // Predicated region
        $region45: #{tpu_custom_call.1} parent=43 // pred_check
          %p341 = pneg %p340
        $region46: #{tpu_custom_call.1} parent=43 // pred_check_branch
          %343 = sbr.rel (%p341) target = $region48
        $region47: #{tpu_custom_call.1} parent=43 // pred_region
          %v344 = vld [vmem:[%s322] sm:$0xff]
          %v345 = vld [vmem:[%s322 + $0x8] sm:$0xff]
          %v346 = vld [vmem:[%s322 + $0x10] sm:$0xff]
          %v347 = vld [vmem:[%s322 + $0x18] sm:$0xff]
          %v348 = vld [vmem:[%s322 + $0x20] sm:$0xff]
          %v349 = vld [vmem:[%s322 + $0x28] sm:$0xff]
          %v350 = vld [vmem:[%s322 + $0x30] sm:$0xff]
          %v351 = vld [vmem:[%s322 + $0x38] sm:$0xff]
          %v352 = vld [vmem:[%s3] sm:$0xff]
          %v353 = vld [vmem:[%s3 + $0x8] sm:$0xff]
          %v354 = vld [vmem:[%s3 + $0x10] sm:$0xff]
          %v355 = vld [vmem:[%s3 + $0x18] sm:$0xff]
          %v356 = vld [vmem:[%s3 + $0x20] sm:$0xff]
          %v357 = vld [vmem:[%s3 + $0x28] sm:$0xff]
          %v358 = vld [vmem:[%s3 + $0x30] sm:$0xff]
          %v359 = vld [vmem:[%s3 + $0x38] sm:$0xff]
          %v360 = vld [vmem:[%s4] sm:$0x3]
          %v362 = vperm.slane %v360, 0
          %v363 = vperm.slane %v360, 1
          %vm366 = vcmask 261120
          %v368 = vsel %vm366, %v344, 0
          %v371 = vsel %vm366, %v345, 0
          %v374 = vsel %vm366, %v346, 0
          %v377 = vsel %vm366, %v347, 0
          %v380 = vsel %vm366, %v348, 0
          %v383 = vsel %vm366, %v349, 0
          %v386 = vsel %vm366, %v350, 0
          %v389 = vsel %vm366, %v351, 0
          %391 = vmatpush.msra.mxu0 0.0
          %392 = vmatpush.msra.mxu0 0.0
          %393 = vmatpush.msra.mxu0 0.0
          %394 = vmatpush.msra.mxu0 0.0
          %395 = vmatpush.msra.mxu0 0.0
          %396 = vmatpush.msra.mxu0 0.0
          %397 = vmatpush.msra.mxu0 0.0
          %398 = vmatpush.msra.mxu0 0.0
          %399 = vmatpush.msra.mxu0 0.0
          %400 = vmatpush.msra.mxu0 0.0
          %401 = vmatpush.msra.mxu0 0.0
          %402 = vmatpush.msra.mxu0 0.0
          %403 = vmatpush.msra.mxu0 %v358
          %404 = vmatpush.msra.mxu0 %v356
          %405 = vmatpush.msra.mxu0 %v354
          %406 = vmatpush.msra.mxu0 %v352
          %407 = vmatmul.f32.gmra.mxu0 %v368
          %v408 = vpop.f32.mrf.mxu0
          %v409 = vadd.f32 %v362, %v408
          %410 = vmatmul.f32.gmra.mxu0 %v371
          %v411 = vpop.f32.mrf.mxu0
          %v412 = vadd.f32 %v362, %v411
          %413 = vmatmul.f32.gmra.mxu0 %v374
          %v414 = vpop.f32.mrf.mxu0
          %v415 = vadd.f32 %v362, %v414
          %416 = vmatmul.f32.gmra.mxu0 %v377
          %v417 = vpop.f32.mrf.mxu0
          %v418 = vadd.f32 %v362, %v417
          %419 = vmatmul.f32.gmra.mxu0 %v380
          %v420 = vpop.f32.mrf.mxu0
          %v421 = vadd.f32 %v362, %v420
          %422 = vmatmul.f32.gmra.mxu0 %v383
          %v423 = vpop.f32.mrf.mxu0
          %v424 = vadd.f32 %v362, %v423
          %425 = vmatmul.f32.gmra.mxu0 %v386
          %v426 = vpop.f32.mrf.mxu0
          %v427 = vadd.f32 %v362, %v426
          %428 = vmatmul.f32.gmra.mxu0 %v389
          %v429 = vpop.f32.mrf.mxu0
          %v430 = vadd.f32 %v362, %v429
          %431 = vdwg.mxu0
          %432 = vmatpush.msra.mxu0 0.0
          %433 = vmatpush.msra.mxu0 0.0
          %434 = vmatpush.msra.mxu0 0.0
          %435 = vmatpush.msra.mxu0 0.0
          %436 = vmatpush.msra.mxu0 0.0
          %437 = vmatpush.msra.mxu0 0.0
          %438 = vmatpush.msra.mxu0 0.0
          %439 = vmatpush.msra.mxu0 0.0
          %440 = vmatpush.msra.mxu0 0.0
          %441 = vmatpush.msra.mxu0 0.0
          %442 = vmatpush.msra.mxu0 0.0
          %443 = vmatpush.msra.mxu0 0.0
          %444 = vmatpush.msra.mxu0 %v359
          %445 = vmatpush.msra.mxu0 %v357
          %446 = vmatpush.msra.mxu0 %v355
          %447 = vmatpush.msra.mxu0 %v353
          %448 = vmatmul.f32.gmra.mxu0 %v368
          %v449 = vpop.f32.mrf.mxu0
          %v450 = vadd.f32 %v363, %v449
          %451 = vmatmul.f32.gmra.mxu0 %v371
          %v452 = vpop.f32.mrf.mxu0
          %v453 = vadd.f32 %v363, %v452
          %454 = vmatmul.f32.gmra.mxu0 %v374
          %v455 = vpop.f32.mrf.mxu0
          %v456 = vadd.f32 %v363, %v455
          %457 = vmatmul.f32.gmra.mxu0 %v377
          %v458 = vpop.f32.mrf.mxu0
          %v459 = vadd.f32 %v363, %v458
          %460 = vmatmul.f32.gmra.mxu0 %v380
          %v461 = vpop.f32.mrf.mxu0
          %v462 = vadd.f32 %v363, %v461
          %463 = vmatmul.f32.gmra.mxu0 %v383
          %v464 = vpop.f32.mrf.mxu0
          %v465 = vadd.f32 %v363, %v464
          %466 = vmatmul.f32.gmra.mxu0 %v386
          %v467 = vpop.f32.mrf.mxu0
          %v468 = vadd.f32 %v363, %v467
          %469 = vmatmul.f32.gmra.mxu0 %v389
          %v470 = vpop.f32.mrf.mxu0
          %v471 = vadd.f32 %v363, %v470
          %472 = vdwg.mxu0
          %473 = vst [vmem:[#allocation2] sm:$0xff] %v409
          %474 = vst.msk [vmem:[#allocation2 + $0x8] sm:$0xff] %vm366, %v450
          %475 = vst [vmem:[#allocation2 + $0x10] sm:$0xff] %v412
          %476 = vst.msk [vmem:[#allocation2 + $0x18] sm:$0xff] %vm366, %v453
          %477 = vst [vmem:[#allocation2 + $0x20] sm:$0xff] %v415
          %478 = vst.msk [vmem:[#allocation2 + $0x28] sm:$0xff] %vm366, %v456
          %479 = vst [vmem:[#allocation2 + $0x30] sm:$0xff] %v418
          %480 = vst.msk [vmem:[#allocation2 + $0x38] sm:$0xff] %vm366, %v459
          %481 = vst [vmem:[#allocation2 + $0x40] sm:$0xff] %v421
          %482 = vst.msk [vmem:[#allocation2 + $0x48] sm:$0xff] %vm366, %v462
          %483 = vst [vmem:[#allocation2 + $0x50] sm:$0xff] %v424
          %484 = vst.msk [vmem:[#allocation2 + $0x58] sm:$0xff] %vm366, %v465
          %485 = vst [vmem:[#allocation2 + $0x60] sm:$0xff] %v427
          %486 = vst.msk [vmem:[#allocation2 + $0x68] sm:$0xff] %vm366, %v468
          %487 = vst [vmem:[#allocation2 + $0x70] sm:$0xff] %v430
          %488 = vst.msk [vmem:[#allocation2 + $0x78] sm:$0xff] %vm366, %v471
        $region48: #{tpu_custom_call.1} parent=43 // pred_fallthru
          _
        %s489 = smul.u32 %s29, 2
        %s490 = sadd.s32 %s489, %s30
        %s491 = smul.u32 %s490, 32
        %s492 = scalar_lea.vmem %s322, %s491
        %v493 = vld [vmem:[%s492] sm:$0xff]
        %v494 = vld [vmem:[%s492 + $0x8] sm:$0xff]
        %v495 = vld [vmem:[%s492 + $0x10] sm:$0xff]
        %v496 = vld [vmem:[%s492 + $0x18] sm:$0xff]
        %v497 = vld [vmem:[%s1] sm:$0xff]
        %v498 = vld [vmem:[%s1 + $0x8] sm:$0xff]
        %v499 = vld [vmem:[%s1 + $0x10] sm:$0xff]
        %v500 = vld [vmem:[%s1 + $0x18] sm:$0xff]
        %v501 = vld [vmem:[%s2] sm:$0x1]
        %v503 = vperm.slane %v501, 0
        %vm505 = vcmask 261120
        %v507 = vsel %vm505, %v493, 0
        %v510 = vsel %vm505, %v494, 0
        %v513 = vsel %vm505, %v495, 0
        %v516 = vsel %vm505, %v496, 0
        %518 = vmatpush.msra.mxu0 0.0
        %519 = vmatpush.msra.mxu0 0.0
        %520 = vmatpush.msra.mxu0 0.0
        %521 = vmatpush.msra.mxu0 0.0
        %522 = vmatpush.msra.mxu0 0.0
        %523 = vmatpush.msra.mxu0 0.0
        %524 = vmatpush.msra.mxu0 0.0
        %525 = vmatpush.msra.mxu0 0.0
        %526 = vmatpush.msra.mxu0 0.0
        %527 = vmatpush.msra.mxu0 0.0
        %528 = vmatpush.msra.mxu0 0.0
        %529 = vmatpush.msra.mxu0 0.0
        %530 = vmatpush.msra.mxu0 %v500
        %531 = vmatpush.msra.mxu0 %v499
        %532 = vmatpush.msra.mxu0 %v498
        %533 = vmatpush.msra.mxu0 %v497
        %534 = vmatmul.f32.gmra.mxu0 %v507
        %v535 = vpop.f32.mrf.mxu0
        %v536 = vadd.f32 %v503, %v535
        %537 = vmatmul.f32.gmra.mxu0 %v510
        %v538 = vpop.f32.mrf.mxu0
        %v539 = vadd.f32 %v503, %v538
        %540 = vmatmul.f32.gmra.mxu0 %v513
        %v541 = vpop.f32.mrf.mxu0
        %v542 = vadd.f32 %v503, %v541
        %543 = vmatmul.f32.gmra.mxu0 %v516
        %v544 = vpop.f32.mrf.mxu0
        %v545 = vadd.f32 %v503, %v544
        %546 = vdwg.mxu0
        %v547 = vld [vmem:[#allocation2] sm:$0xff]
        %v548 = vld [vmem:[#allocation2 + $0x10] sm:$0xff]
        %v549 = vld [vmem:[#allocation2 + $0x20] sm:$0xff]
        %v550 = vld [vmem:[#allocation2 + $0x30] sm:$0xff]
        %v551 = vld [vmem:[#allocation2 + $0x40] sm:$0xff]
        %v552 = vld [vmem:[#allocation2 + $0x50] sm:$0xff]
        %v553 = vld [vmem:[#allocation2 + $0x60] sm:$0xff]
        %v554 = vld [vmem:[#allocation2 + $0x70] sm:$0xff]
        %v555 = vld [vmem:[#allocation2 + $0x8] sm:$0xff]
        %v556 = vld [vmem:[#allocation2 + $0x18] sm:$0xff]
        %v557 = vld [vmem:[#allocation2 + $0x28] sm:$0xff]
        %v558 = vld [vmem:[#allocation2 + $0x38] sm:$0xff]
        %v559 = vld [vmem:[#allocation2 + $0x48] sm:$0xff]
        %v560 = vld [vmem:[#allocation2 + $0x58] sm:$0xff]
        %v561 = vld [vmem:[#allocation2 + $0x68] sm:$0xff]
        %v562 = vld [vmem:[#allocation2 + $0x78] sm:$0xff]
        %563 = vmatpush.xpose.msra.mxu0 0.0
        %564 = vmatpush.xpose.msra.mxu0 0.0
        %565 = vmatpush.xpose.msra.mxu0 0.0
        %566 = vmatpush.xpose.msra.mxu0 0.0
        %567 = vmatpush.xpose.msra.mxu0 0.0
        %568 = vmatpush.xpose.msra.mxu0 0.0
        %569 = vmatpush.xpose.msra.mxu0 0.0
        %570 = vmatpush.xpose.msra.mxu0 0.0
        %571 = vmatpush.xpose.msra.mxu0 %v554
        %572 = vmatpush.xpose.msra.mxu0 %v553
        %573 = vmatpush.xpose.msra.mxu0 %v552
        %574 = vmatpush.xpose.msra.mxu0 %v551
        %575 = vmatpush.xpose.msra.mxu0 %v550
        %576 = vmatpush.xpose.msra.mxu0 %v549
        %577 = vmatpush.xpose.msra.mxu0 %v548
        %578 = vmatpush.xpose.msra.mxu0 %v547
        %579 = vmatmul.f32.gmra.mxu0 %v536
        %v580 = vpop.f32.mrf.mxu0
        %v581 = vadd.f32 0.0, %v580
        %582 = vmatmul.f32.gmra.mxu0 %v539
        %v583 = vpop.f32.mrf.mxu0
        %v584 = vadd.f32 0.0, %v583
        %585 = vmatmul.f32.gmra.mxu0 %v542
        %v586 = vpop.f32.mrf.mxu0
        %v587 = vadd.f32 0.0, %v586
        %588 = vmatmul.f32.gmra.mxu0 %v545
        %v589 = vpop.f32.mrf.mxu0
        %v590 = vadd.f32 0.0, %v589
        %591 = vdwg.mxu0
        %vm592 = vcmask 523264
        %593 = vst.msk [vmem:[%s317] sm:$0xff] %vm592, %v581
        %594 = vst.msk [vmem:[%s317 + $0x8] sm:$0xff] %vm592, %v584
        %595 = vst.msk [vmem:[%s317 + $0x10] sm:$0xff] %vm592, %v587
        %596 = vst.msk [vmem:[%s317 + $0x18] sm:$0xff] %vm592, %v590
        %v597 = vsel %vm592, %v581, -inf
        %598 = vmax.xlane.f32.xlu0 %v597
        %v599 = vpop.xlane.xlu0 %598
        %v600 = vsel %vm592, %v584, -inf
        %601 = vmax.xlane.f32.xlu0 %v600
        %v602 = vpop.xlane.xlu0 %601
        %v603 = vsel %vm592, %v587, -inf
        %604 = vmax.xlane.f32.xlu0 %v603
        %v605 = vpop.xlane.xlu0 %604
        %v606 = vsel %vm592, %v590, -inf
        %607 = vmax.xlane.f32.xlu0 %v606
        %v608 = vpop.xlane.xlu0 %607
        %v609 = vsub.f32 %v581, %v599
        %v610 = vsub.f32 %v584, %v602
        %v611 = vsub.f32 %v587, %v605
        %v612 = vsub.f32 %v590, %v608
        %v613 = vmul.f32 %v609, 1.442695
        %v614 = vpow.pop %v613
        %v615 = vmul.f32 %v610, 1.442695
        %v616 = vpow.pop %v615
        %v617 = vmul.f32 %v611, 1.442695
        %v618 = vpow.pop %v617
        %v619 = vmul.f32 %v612, 1.442695
        %v620 = vpow.pop %v619
        %v621 = vsel %vm592, %v614, 0.0
        %622 = vadd.xlane.f32.xlu0 %v621
        %v623 = vpop.xlane.xlu0 %622
        %v624 = vsel %vm592, %v616, 0.0
        %625 = vadd.xlane.f32.xlu0 %v624
        %v626 = vpop.xlane.xlu0 %625
        %v627 = vsel %vm592, %v618, 0.0
        %628 = vadd.xlane.f32.xlu0 %v627
        %v629 = vpop.xlane.xlu0 %628
        %v630 = vsel %vm592, %v620, 0.0
        %631 = vadd.xlane.f32.xlu0 %v630
        %v632 = vpop.xlane.xlu0 %631
        %v634 = vsel %vm592, %v614, 0
        %v637 = vsel %vm592, %v616, 0
        %v640 = vsel %vm592, %v618, 0
        %v643 = vsel %vm592, %v620, 0
        %645 = vmatpush.msra.mxu0 0.0
        %646 = vmatpush.msra.mxu0 0.0
        %647 = vmatpush.msra.mxu0 0.0
        %648 = vmatpush.msra.mxu0 0.0
        %649 = vmatpush.msra.mxu0 0.0
        %650 = vmatpush.msra.mxu0 0.0
        %651 = vmatpush.msra.mxu0 0.0
        %652 = vmatpush.msra.mxu0 0.0
        %653 = vmatpush.msra.mxu0 %v562
        %654 = vmatpush.msra.mxu0 %v561
        %655 = vmatpush.msra.mxu0 %v560
        %656 = vmatpush.msra.mxu0 %v559
        %657 = vmatpush.msra.mxu0 %v558
        %658 = vmatpush.msra.mxu0 %v557
        %659 = vmatpush.msra.mxu0 %v556
        %660 = vmatpush.msra.mxu0 %v555
        %661 = vmatmul.f32.gmra.mxu0 %v634
        %v662 = vpop.f32.mrf.mxu0
        %v663 = vadd.f32 0.0, %v662
        %664 = vmatmul.f32.gmra.mxu0 %v637
        %v665 = vpop.f32.mrf.mxu0
        %v666 = vadd.f32 0.0, %v665
        %667 = vmatmul.f32.gmra.mxu0 %v640
        %v668 = vpop.f32.mrf.mxu0
        %v669 = vadd.f32 0.0, %v668
        %670 = vmatmul.f32.gmra.mxu0 %v643
        %v671 = vpop.f32.mrf.mxu0
        %v672 = vadd.f32 0.0, %v671
        %673 = vdwg.mxu0
        %v674 = vrcp.pop %v623
        %v675 = vmul.f32 %v623, %v674
        %v676 = vsub.f32 1.0, %v675
        %v677 = vmul.f32 %v674, %v676
        %v678 = vadd.f32 %v674, %v677
        %vm679 = vweird.f32 %v623
        %vm680 = vweird.f32 %v674
        %vm681 = vmor %vm679, %vm680
        %v682 = vsel %vm681, %v674, %v678
        %v683 = vand.u32 2147483647, %v623
        %vm684 = vcmp.eq.f32.partialorder %v683, 8.507059e+37
        %v685 = vand.u32 %v623, 2147483648
        %v686 = vor.u32 1.1754944e-38, %v685
        %v687 = vsel %vm684, %v686, %v682
        %v688 = vmul.f32 1.0, %v687
        %v689 = vrcp.pop %v626
        %v690 = vmul.f32 %v626, %v689
        %v691 = vsub.f32 1.0, %v690
        %v692 = vmul.f32 %v689, %v691
        %v693 = vadd.f32 %v689, %v692
        %vm694 = vweird.f32 %v626
        %vm695 = vweird.f32 %v689
        %vm696 = vmor %vm694, %vm695
        %v697 = vsel %vm696, %v689, %v693
        %v698 = vand.u32 2147483647, %v626
        %vm699 = vcmp.eq.f32.partialorder %v698, 8.507059e+37
        %v700 = vand.u32 %v626, 2147483648
        %v701 = vor.u32 1.1754944e-38, %v700
        %v702 = vsel %vm699, %v701, %v697
        %v703 = vmul.f32 1.0, %v702
        %v704 = vrcp.pop %v629
        %v705 = vmul.f32 %v629, %v704
        %v706 = vsub.f32 1.0, %v705
        %v707 = vmul.f32 %v704, %v706
        %v708 = vadd.f32 %v704, %v707
        %vm709 = vweird.f32 %v629
        %vm710 = vweird.f32 %v704
        %vm711 = vmor %vm709, %vm710
        %v712 = vsel %vm711, %v704, %v708
        %v713 = vand.u32 2147483647, %v629
        %vm714 = vcmp.eq.f32.partialorder %v713, 8.507059e+37
        %v715 = vand.u32 %v629, 2147483648
        %v716 = vor.u32 1.1754944e-38, %v715
        %v717 = vsel %vm714, %v716, %v712
        %v718 = vmul.f32 1.0, %v717
        %v719 = vrcp.pop %v632
        %v720 = vmul.f32 %v632, %v719
        %v721 = vsub.f32 1.0, %v720
        %v722 = vmul.f32 %v719, %v721
        %v723 = vadd.f32 %v719, %v722
        %vm724 = vweird.f32 %v632
        %vm725 = vweird.f32 %v719
        %vm726 = vmor %vm724, %vm725
        %v727 = vsel %vm726, %v719, %v723
        %v728 = vand.u32 2147483647, %v632
        %vm729 = vcmp.eq.f32.partialorder %v728, 8.507059e+37
        %v730 = vand.u32 %v632, 2147483648
        %v731 = vor.u32 1.1754944e-38, %v730
        %v732 = vsel %vm729, %v731, %v727
        %v733 = vmul.f32 1.0, %v732
        %s734 = sld [smem:[#allocation3]]
        %v735 = vmul.f32 %v663, %v688
        %v736 = vmul.f32 %v666, %v703
        %v737 = vmul.f32 %v669, %v718
        %v738 = vmul.f32 %v672, %v733
        %v739 = vstv %s734
        %v740 = vmul.f32 %v739, %v735
        %v741 = vmul.f32 %v739, %v736
        %v742 = vmul.f32 %v739, %v737
        %v743 = vmul.f32 %v739, %v738
        %v744 = vadd.f32 %v740, %v493
        %v745 = vadd.f32 %v741, %v494
        %v746 = vadd.f32 %v742, %v495
        %v747 = vadd.f32 %v743, %v496
        %748 = vst.msk [vmem:[%s333] sm:$0xff] %vm505, %v744
        %749 = vst.msk [vmem:[%s333 + $0x8] sm:$0xff] %vm505, %v745
        %750 = vst.msk [vmem:[%s333 + $0x10] sm:$0xff] %vm505, %v746
        %751 = vst.msk [vmem:[%s333 + $0x18] sm:$0xff] %vm505, %v747
        %s752 = smul.u32 %s29, 2
        %s753 = sadd.s32 %s752, %s30
        %s754 = smul.u32 4, %s753
        %p755 = scmp.lt.s32.totalorder %s28, 1
        %s756 = scalar_select %p755, %s28, 1
        %p757 = scmp.lt.s32.totalorder %s754, 7
        %s758 = scalar_select %p757, %s754, 7
        %s759 = smul.addr %s756, 8
        %s760 = sadd.s32 %s758, %s759
        %s761 = smul.addr %s760, 8
        %s762 = scalar_lea.vmem %s6, %s761
        %s763 = sand.u32 %s219, 1
        %s764 = scalar_lea.sflag [#allocation5], %s763
        %s765 = sand.u32 %s219, 1
        %s766 = smul.addr %s765, 32
        %s767 = scalar_lea.vmem [#allocation4], %s766
        // Predicated region
        $region49: #{tpu_custom_call.1} parent=43 // pred_check
          %p768 = pneg %p197
        $region50: #{tpu_custom_call.1} parent=43 // pred_check_branch
          %770 = sbr.rel (%p768) target = $region52
        $region51: #{tpu_custom_call.1} parent=43 // pred_region
          %s771 = smul.u32 %s29, 2
          %s772 = sadd.s32 %s771, %s30
          %s773 = smul.u32 4, %s772
        $region52: #{tpu_custom_call.1} parent=43 // pred_fallthru
          _
        // Predicated region
        $region53: #{tpu_custom_call.1} parent=43 // pred_check
          %p774 = pneg %p229
        $region54: #{tpu_custom_call.1} parent=43 // pred_check_branch
          %776 = sbr.rel (%p774) target = $region56
        $region55: #{tpu_custom_call.1} parent=43 // pred_region
          %s777 = smul.u32 %s29, 2
          %s778 = sadd.s32 %s777, %s30
          %s779 = smul.u32 4, %s778
          %781 = vsyncadd %s764, 0
          %s782 = smul.addr %s28, 8
          %s783 = sadd.s32 %s779, %s782
          %s784 = smul.addr %s783, 8
          %s785 = scalar_lea.hbm %s7, %s784
          %s786 = sshll.u32 %s767, 4
          %s787 = int_to_ptr.vmem [resolvable:$true] %s786
          %s788 = sshll.u32 %s785, 4
          %s789 = int_to_ptr.hbm [resolvable:$true] %s788
          %794 = dma.vmem_to_hbm [thread:$0]  %s787, 512, %s789, %s764, 128, 128, 8
        $region56: #{tpu_custom_call.1} parent=43 // pred_fallthru
          _
      $region44: #{tpu_custom_call.1} parent=5 // pred_fallthru
        _
      %p795 = scmp.le.s32.totalorder 2, %s18
      // Predicated region
      $region57: #{tpu_custom_call.1} parent=5 // pred_check
        %p796 = pneg %p795
      $region58: #{tpu_custom_call.1} parent=5 // pred_check_branch
        %798 = sbr.rel (%p796) target = $region60
      $region59: #{tpu_custom_call.1} parent=5 // pred_region
        %s799 = ssub.s32 %s18, 2
        // Predicated region
        $region61: #{tpu_custom_call.1} parent=59 // pred_check
          %p800 = pneg %p203
        $region62: #{tpu_custom_call.1} parent=59 // pred_check_branch
          %802 = sbr.rel (%p800) target = $region64
        $region63: #{tpu_custom_call.1} parent=59 // pred_region
          %s803 = smul.u32 %s32, 2
          %s804 = sadd.s32 %s803, %s33
          %s805 = smul.u32 4, %s804
          %p806 = scmp.lt.s32.totalorder %s31, 1
          %s807 = scalar_select %p806, %s31, 1
          %p808 = scmp.lt.s32.totalorder %s805, 7
          %s809 = scalar_select %p808, %s805, 7
          %s810 = smul.addr %s807, 8
          %s811 = sadd.s32 %s809, %s810
          %s812 = smul.addr %s811, 8
          %s813 = scalar_lea.vmem %s6, %s812
        $region64: #{tpu_custom_call.1} parent=59 // pred_fallthru
          _
        // Predicated region
        $region65: #{tpu_custom_call.1} parent=59 // pred_check
          %p814 = pneg %p235
        $region66: #{tpu_custom_call.1} parent=59 // pred_check_branch
          %816 = sbr.rel (%p814) target = $region68
        $region67: #{tpu_custom_call.1} parent=59 // pred_region
          %s817 = sand.u32 %s220, 1
          %s818 = scalar_lea.sflag [#allocation5], %s817
          %s819 = sand.u32 %s220, 1
          %s820 = smul.addr %s819, 32
          %s821 = scalar_lea.vmem [#allocation4], %s820
          %823 = dma.done %s818, 512
        $region68: #{tpu_custom_call.1} parent=59 // pred_fallthru
          _
      $region60: #{tpu_custom_call.1} parent=5 // pred_fallthru
        _
    $region6: #{tpu_custom_call.1} parent=1 // loop_footer
      %s22 = sadd.s32 1, %s18
    $region7: #{tpu_custom_call.1} parent=1 // loop_footer_branch
      %17 = sbr.rel target = $region3
    $region8: #{tpu_custom_call.1} parent=1 // loop_exit
      _
    %824 = vsyncpa [#allocation5], 1
    %s825 = scalar_lea.sflag [#allocation5], 1
    %826 = vsyncpa %s825, 1

// kernel: tpu_custom_call.1
$region0: #{tpu_custom_call.1}
  #allocation0 [shape = 'u32[]', space=smem, size = 0x4, offset = 0x4, fixed_abs, tag = 'smem constant byte address 0x4 - core index']
  #allocation1 [shape = 'u32[72,128]{1,0:T(1,128)}', space=vmem, size = 0x9000, scoped, tag = 'internal scratch']
  #allocation2 [shape = 'f32[64,160]{1,0:T(8,128)}', space=vmem, size = 0x10000, scoped, tag = 'scratch operand']
  #allocation3 [shape = 'f32[1]{0:T(128)S(6)}', space=smem, size = 0x200, scoped, tag = 'scoped memory for tpu_custom_call.1']
  %s0 = inlined_call_operand.vmem [shape: f32[2,64,32], index: 0, kind: input, shape index: {}]
  %s1 = inlined_call_operand.vmem [shape: f32[32,128], index: 1, kind: input, shape index: {}]
  %s2 = inlined_call_operand.vmem [shape: f32[1,128], index: 2, kind: input, shape index: {}]
  %s3 = inlined_call_operand.vmem [shape: f32[32,160], index: 3, kind: input, shape index: {}]
  %s4 = inlined_call_operand.vmem [shape: f32[1,160], index: 4, kind: input, shape index: {}]
  %s5 = inlined_call_operand.<no memory space> [shape: f32[1], index: 5, kind: input, shape index: {}]
  %s6 = inlined_call_operand.vmem [shape: f32[2,64,32], index: 6, kind: output, shape index: {0}]
  %s7 = inlined_call_operand.hbm [shape: f32[2,64,64], index: 7, kind: output, shape index: {1}]
  %8 = xla_tuple %s6, %s7
  %s9 = sld [smem:[#allocation0]]
  $region69: #{tpu_custom_call.1} parent=0
    _
  %s11 = ssub.s32 1, %s9
  %s12 = scalar_select 0, %s11, %s9
  %13 = sst [smem:[#allocation3]] %s5
  $region1: #{tpu_custom_call.1} parent=0
    #allocation4 [shape = 'u8[32768]{0}', space=vmem, size = 0x8000, scoped, tag = 'output window, operand 1']
    #allocation5 [shape = 's32[2]{0}', space=sflag, size = 0x8, scoped, tag = 'scoped memory for tpu_custom_call.1']
    %14 = vsyncpa [#allocation5], 0
    %s15 = scalar_lea.sflag [#allocation5], 1
    %16 = vsyncpa %s15, 0
    loop: start=0, step=1, limit=6
    $region2: #{tpu_custom_call.1} parent=1 // loop_pre_header
      _
    $region3: #{tpu_custom_call.1} parent=1 // loop_header
      %s18 = sphi 0, %s22
      %p19 = scmp.ge.s32.totalorder %s18, 6
      %s25 = sphi 0, %s44
      %s26 = sphi 0, %s40
      %s27 = sphi 0, %s36
      %s28 = sphi 0, %s25
      %s29 = sphi 0, %s26
      %s30 = sphi 0, %s27
      %s31 = sphi 0, %s28
      %s32 = sphi 0, %s29
      %s33 = sphi 0, %s30
      %s47 = sphi 0, %s49
      %s50 = sphi 0, %s47
      %s51 = sphi 0, %s50
      %s67 = sphi 0, %s51
      %s71 = sphi 0, %s71
      %s73 = sphi 0, %s71
      %s74 = sphi 0, %s73
      %s88 = sphi 0, %s74
      %s92 = sphi 0, %s92
      %s94 = sphi 0, %s92
      %s95 = sphi 0, %s94
      %s109 = sphi 0, %s95
      %s113 = sphi 0, %s113
      %s115 = sphi 0, %s113
      %s116 = sphi 0, %s115
      %s130 = sphi 0, %s116
      %s134 = sphi 0, %s134
      %s136 = sphi 0, %s134
      %s137 = sphi 0, %s136
      %s151 = sphi 0, %s137
      %s155 = sphi 0, %s155
      %s157 = sphi 0, %s155
      %s158 = sphi 0, %s157
      %s172 = sphi 0, %s158
      %s184 = sphi 0, %s186
      %s187 = sphi 0, %s184
      %s188 = sphi 0, %s187
      %s204 = sphi 0, %s188
      %s216 = sphi 0, %s218
      %s219 = sphi 0, %s216
      %s220 = sphi 0, %s219
      %s236 = sphi 0, %s220
    $region4: #{tpu_custom_call.1} parent=1 // loop_header_branch
      %21 = sbr.rel (%p19) target = $region8
    $region5: #{tpu_custom_call.1} parent=1 // loop_body
      %s23 = ssub.s32 %s18, 1
      %s24 = ssub.s32 %s18, 2
      %s34 = sadd.s32 1, %s27
      %p35 = scmp.ge.s32.totalorder %s34, 2
      %s36 = scalar_select %p35, 0, %s34
      %s37 = sadd.s32 1, %s26
      %s38 = scalar_select %p35, %s37, %s26
      %p39 = scmp.ge.s32.totalorder %s38, 1
      %s40 = scalar_select %p39, 0, %s38
      %s41 = sadd.s32 1, %s25
      %s42 = scalar_select %p39, %s41, %s25
      %p43 = scmp.ge.s32.totalorder %s42, 2
      %s44 = scalar_select %p43, 0, %s42
      %s45 = ssub.s32 %s25, %s44
      %p46 = scmp.eq.s32.totalorder %s45, 0
      %s48 = sadd.s32 %s47, 1
      %s49 = scalar_select %p46, %s47, %s48
      %p52 = pneg %p46
      %p53 = scmp.eq.s32.totalorder %s18, 3
      %p54 = por %p52, %p53
      %p55 = scmp.ne.s32.totalorder %s47, %s50
      %p56 = scmp.eq.s32.totalorder %s18, 0
      %p57 = por %p55, %p56
      %p58 = scmp.ne.s32.totalorder %s47, %s50
      %p59 = scmp.eq.s32.totalorder %s23, 3
      %p60 = por %p58, %p59
      %p61 = scmp.ne.s32.totalorder %s50, %s51
      %p62 = scmp.eq.s32.totalorder %s23, 0
      %p63 = por %p61, %p62
      %p64 = scmp.ne.s32.totalorder %s50, %s51
      %p65 = scmp.eq.s32.totalorder %s24, 3
      %p66 = por %p64, %p65
      %p68 = scmp.ne.s32.totalorder %s51, %s67
      %p69 = scmp.eq.s32.totalorder %s24, 0
      %p70 = por %p68, %p69
      %s72 = sadd.s32 %s71, 1
      %p75 = scmp.eq.s32.totalorder %s18, 3
      %p76 = scmp.ne.s32.totalorder %s71, %s73
      %p77 = scmp.eq.s32.totalorder %s18, 0
      %p78 = por %p76, %p77
      %p79 = scmp.ne.s32.totalorder %s71, %s73
      %p80 = scmp.eq.s32.totalorder %s23, 3
      %p81 = por %p79, %p80
      %p82 = scmp.ne.s32.totalorder %s73, %s74
      %p83 = scmp.eq.s32.totalorder %s23, 0
      %p84 = por %p82, %p83
      %p85 = scmp.ne.s32.totalorder %s73, %s74
      %p86 = scmp.eq.s32.totalorder %s24, 3
      %p87 = por %p85, %p86
      %p89 = scmp.ne.s32.totalorder %s74, %s88
      %p90 = scmp.eq.s32.totalorder %s24, 0
      %p91 = por %p89, %p90
      %s93 = sadd.s32 %s92, 1
      %p96 = scmp.eq.s32.totalorder %s18, 3
      %p97 = scmp.ne.s32.totalorder %s92, %s94
      %p98 = scmp.eq.s32.totalorder %s18, 0
      %p99 = por %p97, %p98
      %p100 = scmp.ne.s32.totalorder %s92, %s94
      %p101 = scmp.eq.s32.totalorder %s23, 3
      %p102 = por %p100, %p101
      %p103 = scmp.ne.s32.totalorder %s94, %s95
      %p104 = scmp.eq.s32.totalorder %s23, 0
      %p105 = por %p103, %p104
      %p106 = scmp.ne.s32.totalorder %s94, %s95
      %p107 = scmp.eq.s32.totalorder %s24, 3
      %p108 = por %p106, %p107
      %p110 = scmp.ne.s32.totalorder %s95, %s109
      %p111 = scmp.eq.s32.totalorder %s24, 0
      %p112 = por %p110, %p111
      %s114 = sadd.s32 %s113, 1
      %p117 = scmp.eq.s32.totalorder %s18, 3
      %p118 = scmp.ne.s32.totalorder %s113, %s115
      %p119 = scmp.eq.s32.totalorder %s18, 0
      %p120 = por %p118, %p119
      %p121 = scmp.ne.s32.totalorder %s113, %s115
      %p122 = scmp.eq.s32.totalorder %s23, 3
      %p123 = por %p121, %p122
      %p124 = scmp.ne.s32.totalorder %s115, %s116
      %p125 = scmp.eq.s32.totalorder %s23, 0
      %p126 = por %p124, %p125
      %p127 = scmp.ne.s32.totalorder %s115, %s116
      %p128 = scmp.eq.s32.totalorder %s24, 3
      %p129 = por %p127, %p128
      %p131 = scmp.ne.s32.totalorder %s116, %s130
      %p132 = scmp.eq.s32.totalorder %s24, 0
      %p133 = por %p131, %p132
      %s135 = sadd.s32 %s134, 1
      %p138 = scmp.eq.s32.totalorder %s18, 3
      %p139 = scmp.ne.s32.totalorder %s134, %s136
      %p140 = scmp.eq.s32.totalorder %s18, 0
      %p141 = por %p139, %p140
      %p142 = scmp.ne.s32.totalorder %s134, %s136
      %p143 = scmp.eq.s32.totalorder %s23, 3
      %p144 = por %p142, %p143
      %p145 = scmp.ne.s32.totalorder %s136, %s137
      %p146 = scmp.eq.s32.totalorder %s23, 0
      %p147 = por %p145, %p146
      %p148 = scmp.ne.s32.totalorder %s136, %s137
      %p149 = scmp.eq.s32.totalorder %s24, 3
      %p150 = por %p148, %p149
      %p152 = scmp.ne.s32.totalorder %s137, %s151
      %p153 = scmp.eq.s32.totalorder %s24, 0
      %p154 = por %p152, %p153
      %s156 = sadd.s32 %s155, 1
      %p159 = scmp.eq.s32.totalorder %s18, 3
      %p160 = scmp.ne.s32.totalorder %s155, %s157
      %p161 = scmp.eq.s32.totalorder %s18, 0
      %p162 = por %p160, %p161
      %p163 = scmp.ne.s32.totalorder %s155, %s157
      %p164 = scmp.eq.s32.totalorder %s23, 3
      %p165 = por %p163, %p164
      %p166 = scmp.ne.s32.totalorder %s157, %s158
      %p167 = scmp.eq.s32.totalorder %s23, 0
      %p168 = por %p166, %p167
      %p169 = scmp.ne.s32.totalorder %s157, %s158
      %p170 = scmp.eq.s32.totalorder %s24, 3
      %p171 = por %p169, %p170
      %p173 = scmp.ne.s32.totalorder %s158, %s172
      %p174 = scmp.eq.s32.totalorder %s24, 0
      %p175 = por %p173, %p174
      %s176 = smul.u32 %s26, 2
      %s177 = sadd.s32 %s176, %s27
      %s178 = smul.u32 %s40, 2
      %s179 = sadd.s32 %s178, %s36
      %s180 = ssub.s32 %s25, %s44
      %s181 = ssub.s32 %s177, %s179
      %s182 = sor.u32 %s180, %s181
      %p183 = scmp.eq.s32.totalorder %s182, 0
      %s185 = sadd.s32 %s184, 1
      %s186 = scalar_select %p183, %s184, %s185
      %p189 = pneg %p183
      %p190 = scmp.eq.s32.totalorder %s18, 3
      %p191 = por %p189, %p190
      %p192 = scmp.ne.s32.totalorder %s184, %s187
      %p193 = scmp.eq.s32.totalorder %s18, 0
      %p194 = por %p192, %p193
      %p195 = scmp.ne.s32.totalorder %s184, %s187
      %p196 = scmp.eq.s32.totalorder %s23, 3
      %p197 = por %p195, %p196
      %p198 = scmp.ne.s32.totalorder %s187, %s188
      %p199 = scmp.eq.s32.totalorder %s23, 0
      %p200 = por %p198, %p199
      %p201 = scmp.ne.s32.totalorder %s187, %s188
      %p202 = scmp.eq.s32.totalorder %s24, 3
      %p203 = por %p201, %p202
      %p205 = scmp.ne.s32.totalorder %s188, %s204
      %p206 = scmp.eq.s32.totalorder %s24, 0
      %p207 = por %p205, %p206
      %s208 = smul.u32 %s26, 2
      %s209 = sadd.s32 %s208, %s27
      %s210 = smul.u32 %s40, 2
      %s211 = sadd.s32 %s210, %s36
      %s212 = ssub.s32 %s25, %s44
      %s213 = ssub.s32 %s209, %s211
      %s214 = sor.u32 %s212, %s213
      %p215 = scmp.eq.s32.totalorder %s214, 0
      %s217 = sadd.s32 %s216, 1
      %s218 = scalar_select %p215, %s216, %s217
      %p221 = pneg %p215
      %p222 = scmp.eq.s32.totalorder %s18, 3
      %p223 = por %p221, %p222
      %p224 = scmp.ne.s32.totalorder %s216, %s219
      %p225 = scmp.eq.s32.totalorder %s18, 0
      %p226 = por %p224, %p225
      %p227 = scmp.ne.s32.totalorder %s216, %s219
      %p228 = scmp.eq.s32.totalorder %s23, 3
      %p229 = por %p227, %p228
      %p230 = scmp.ne.s32.totalorder %s219, %s220
      %p231 = scmp.eq.s32.totalorder %s23, 0
      %p232 = por %p230, %p231
      %p233 = scmp.ne.s32.totalorder %s219, %s220
      %p234 = scmp.eq.s32.totalorder %s24, 3
      %p235 = por %p233, %p234
      %p237 = scmp.ne.s32.totalorder %s220, %s236
      %p238 = scmp.eq.s32.totalorder %s24, 0
      %p239 = por %p237, %p238
      %p240 = scmp.le.s32.totalorder 1, %s18
      %p241 = scmp.lt.s32.totalorder %s18, 5
      %p242 = pnand %p240, %p241
      %p243 = pneg %p242
      // Predicated region
      $region9: #{tpu_custom_call.1} parent=5 // pred_check
        _
      $region10: #{tpu_custom_call.1} parent=5 // pred_check_branch
        %245 = sbr.rel (%p242) target = $region12
      $region11: #{tpu_custom_call.1} parent=5 // pred_region
        %s246 = ssub.s32 %s18, 1
        // Predicated region
        $region13: #{tpu_custom_call.1} parent=11 // pred_check
          %p247 = pneg %p84
        $region14: #{tpu_custom_call.1} parent=11 // pred_check_branch
          %249 = sbr.rel (%p247) target = $region16
        $region15: #{tpu_custom_call.1} parent=11 // pred_region
          _
        $region16: #{tpu_custom_call.1} parent=11 // pred_fallthru
          _
        // Predicated region
        $region17: #{tpu_custom_call.1} parent=11 // pred_check
          %p250 = pneg %p105
        $region18: #{tpu_custom_call.1} parent=11 // pred_check_branch
          %252 = sbr.rel (%p250) target = $region20
        $region19: #{tpu_custom_call.1} parent=11 // pred_region
          _
        $region20: #{tpu_custom_call.1} parent=11 // pred_fallthru
          _
        // Predicated region
        $region21: #{tpu_custom_call.1} parent=11 // pred_check
          %p253 = pneg %p126
        $region22: #{tpu_custom_call.1} parent=11 // pred_check_branch
          %255 = sbr.rel (%p253) target = $region24
        $region23: #{tpu_custom_call.1} parent=11 // pred_region
          _
        $region24: #{tpu_custom_call.1} parent=11 // pred_fallthru
          _
        // Predicated region
        $region25: #{tpu_custom_call.1} parent=11 // pred_check
          %p256 = pneg %p147
        $region26: #{tpu_custom_call.1} parent=11 // pred_check_branch
          %258 = sbr.rel (%p256) target = $region28
        $region27: #{tpu_custom_call.1} parent=11 // pred_region
          _
        $region28: #{tpu_custom_call.1} parent=11 // pred_fallthru
          _
        // Predicated region
        $region29: #{tpu_custom_call.1} parent=11 // pred_check
          %p259 = pneg %p168
        $region30: #{tpu_custom_call.1} parent=11 // pred_check_branch
          %261 = sbr.rel (%p259) target = $region32
        $region31: #{tpu_custom_call.1} parent=11 // pred_region
          _
        $region32: #{tpu_custom_call.1} parent=11 // pred_fallthru
          _
      $region12: #{tpu_custom_call.1} parent=5 // pred_fallthru
        _
      %p262 = scmp.lt.s32.totalorder %s18, 4
      // Predicated region
      $region33: #{tpu_custom_call.1} parent=5 // pred_check
        %p263 = pneg %p262
      $region34: #{tpu_custom_call.1} parent=5 // pred_check_branch
        %265 = sbr.rel (%p263) target = $region36
      $region35: #{tpu_custom_call.1} parent=5 // pred_region
        // Predicated region
        $region37: #{tpu_custom_call.1} parent=35 // pred_check
          %p266 = pneg %p57
        $region38: #{tpu_custom_call.1} parent=35 // pred_check_branch
          %268 = sbr.rel (%p266) target = $region40
        $region39: #{tpu_custom_call.1} parent=35 // pred_region
          %p269 = scmp.lt.s32.totalorder %s25, 1
          %s270 = scalar_select %p269, %s25, 1
          %s271 = smul.addr %s270, 8
          %s272 = smul.addr %s271, 8
          %s273 = scalar_lea.vmem %s0, %s272
        $region40: #{tpu_custom_call.1} parent=35 // pred_fallthru
          _
      $region36: #{tpu_custom_call.1} parent=5 // pred_fallthru
        _
      %p274 = scmp.le.s32.totalorder 1, %s18
      %p275 = scmp.lt.s32.totalorder %s18, 5
      %p276 = pnand %p274, %p275
      %p277 = pneg %p276
      // Predicated region
      $region41: #{tpu_custom_call.1} parent=5 // pred_check
        _
      $region42: #{tpu_custom_call.1} parent=5 // pred_check_branch
        %279 = sbr.rel (%p276) target = $region44
      $region43: #{tpu_custom_call.1} parent=5 // pred_region
        %s280 = ssub.s32 %s18, 1
        %p281 = scmp.lt.s32.totalorder %s28, 1
        %s282 = scalar_select %p281, %s28, 1
        %s283 = smul.addr %s282, 8
        %s284 = smul.addr %s283, 8
        %s285 = scalar_lea.vmem %s0, %s284
        %p286 = pneg %p63
        %p287 = pneg %p60
        %p288 = pneg %p84
        %p289 = pneg %p81
        %p290 = pneg %p105
        %p291 = pneg %p102
        %p292 = pneg %p126
        %p293 = pneg %p123
        %p294 = pneg %p147
        %p295 = pneg %p144
        %p296 = pneg %p168
        %p297 = pneg %p165
        %p298 = pneg %p200
        %p299 = pneg %p197
        %s300 = smul.u32 %s29, 2
        %s301 = sadd.s32 %s300, %s30
        %s302 = smul.u32 4, %s301
        %p303 = scmp.lt.s32.totalorder %s28, 1
        %s304 = scalar_select %p303, %s28, 1
        %p305 = scmp.lt.s32.totalorder %s302, 7
        %s306 = scalar_select %p305, %s302, 7
        %s307 = smul.addr %s304, 8
        %s308 = sadd.s32 %s306, %s307
        %s309 = smul.addr %s308, 8
        %s310 = scalar_lea.vmem %s6, %s309
        %p311 = pneg %p232
        %p312 = pneg %p229
        %s313 = sand.u32 %s219, 1
        %s314 = scalar_lea.sflag [#allocation5], %s313
        %s315 = sand.u32 %s219, 1
        %s316 = smul.addr %s315, 32
        %s317 = scalar_lea.vmem [#allocation4], %s316
        %p318 = scmp.lt.s32.totalorder %s28, 1
        %s319 = scalar_select %p318, %s28, 1
        %s320 = smul.addr %s319, 8
        %s321 = smul.addr %s320, 8
        %s322 = scalar_lea.vmem %s0, %s321
        %s323 = smul.u32 %s29, 2
        %s324 = sadd.s32 %s323, %s30
        %s325 = smul.u32 4, %s324
        %p326 = scmp.lt.s32.totalorder %s28, 1
        %s327 = scalar_select %p326, %s28, 1
        %p328 = scmp.lt.s32.totalorder %s325, 7
        %s329 = scalar_select %p328, %s325, 7
        %s330 = smul.addr %s327, 8
        %s331 = sadd.s32 %s329, %s330
        %s332 = smul.addr %s331, 8
        %s333 = scalar_lea.vmem %s6, %s332
        %s334 = smul.u32 %s29, 2
        %s335 = sadd.s32 %s334, %s30
        %s336 = smul.u32 4, %s335
        %s337 = smul.u32 %s29, 2
        %s338 = sadd.s32 %s337, %s30
        %s339 = smul.u32 4, %s338
        %p340 = scmp.eq.s32.totalorder %s30, 0
        // Predicated region
        $region45: #{tpu_custom_call.1} parent=43 // pred_check
          %p341 = pneg %p340
        $region46: #{tpu_custom_call.1} parent=43 // pred_check_branch
          %343 = sbr.rel (%p341) target = $region48
        $region47: #{tpu_custom_call.1} parent=43 // pred_region
          %v344 = vld [vmem:[%s322] sm:$0xff]
          %v345 = vld [vmem:[%s322 + $0x8] sm:$0xff]
          %v346 = vld [vmem:[%s322 + $0x10] sm:$0xff]
          %v347 = vld [vmem:[%s322 + $0x18] sm:$0xff]
          %v348 = vld [vmem:[%s322 + $0x20] sm:$0xff]
          %v349 = vld [vmem:[%s322 + $0x28] sm:$0xff]
          %v350 = vld [vmem:[%s322 + $0x30] sm:$0xff]
          %v351 = vld [vmem:[%s322 + $0x38] sm:$0xff]
          %v352 = vld [vmem:[%s3] sm:$0xff]
          %v353 = vld [vmem:[%s3 + $0x8] sm:$0xff]
          %v354 = vld [vmem:[%s3 + $0x10] sm:$0xff]
          %v355 = vld [vmem:[%s3 + $0x18] sm:$0xff]
          %v356 = vld [vmem:[%s3 + $0x20] sm:$0xff]
          %v357 = vld [vmem:[%s3 + $0x28] sm:$0xff]
          %v358 = vld [vmem:[%s3 + $0x30] sm:$0xff]
          %v359 = vld [vmem:[%s3 + $0x38] sm:$0xff]
          %v360 = vld [vmem:[%s4] sm:$0x3]
          %v362 = vperm.slane %v360, 0
          %v363 = vperm.slane %v360, 1
          %vm366 = vcmask 261120
          %v368 = vsel %vm366, %v344, 0
          %v371 = vsel %vm366, %v345, 0
          %v374 = vsel %vm366, %v346, 0
          %v377 = vsel %vm366, %v347, 0
          %v380 = vsel %vm366, %v348, 0
          %v383 = vsel %vm366, %v349, 0
          %v386 = vsel %vm366, %v350, 0
          %v389 = vsel %vm366, %v351, 0
          %391 = vmatpush.msra.mxu0 0.0
          %392 = vmatpush.msra.mxu0 0.0
          %393 = vmatpush.msra.mxu0 0.0
          %394 = vmatpush.msra.mxu0 0.0
          %395 = vmatpush.msra.mxu0 0.0
          %396 = vmatpush.msra.mxu0 0.0
          %397 = vmatpush.msra.mxu0 0.0
          %398 = vmatpush.msra.mxu0 0.0
          %399 = vmatpush.msra.mxu0 0.0
          %400 = vmatpush.msra.mxu0 0.0
          %401 = vmatpush.msra.mxu0 0.0
          %402 = vmatpush.msra.mxu0 0.0
          %403 = vmatpush.msra.mxu0 %v358
          %404 = vmatpush.msra.mxu0 %v356
          %405 = vmatpush.msra.mxu0 %v354
          %406 = vmatpush.msra.mxu0 %v352
          %407 = vmatmul.f32.gmra.mxu0 %v368
          %v408 = vpop.f32.mrf.mxu0
          %v409 = vadd.f32 %v362, %v408
          %410 = vmatmul.f32.gmra.mxu0 %v371
          %v411 = vpop.f32.mrf.mxu0
          %v412 = vadd.f32 %v362, %v411
          %413 = vmatmul.f32.gmra.mxu0 %v374
          %v414 = vpop.f32.mrf.mxu0
          %v415 = vadd.f32 %v362, %v414
          %416 = vmatmul.f32.gmra.mxu0 %v377
          %v417 = vpop.f32.mrf.mxu0
          %v418 = vadd.f32 %v362, %v417
          %419 = vmatmul.f32.gmra.mxu0 %v380
          %v420 = vpop.f32.mrf.mxu0
          %v421 = vadd.f32 %v362, %v420
          %422 = vmatmul.f32.gmra.mxu0 %v383
          %v423 = vpop.f32.mrf.mxu0
          %v424 = vadd.f32 %v362, %v423
          %425 = vmatmul.f32.gmra.mxu0 %v386
          %v426 = vpop.f32.mrf.mxu0
          %v427 = vadd.f32 %v362, %v426
          %428 = vmatmul.f32.gmra.mxu0 %v389
          %v429 = vpop.f32.mrf.mxu0
          %v430 = vadd.f32 %v362, %v429
          %431 = vdwg.mxu0
          %432 = vmatpush.msra.mxu0 0.0
          %433 = vmatpush.msra.mxu0 0.0
          %434 = vmatpush.msra.mxu0 0.0
          %435 = vmatpush.msra.mxu0 0.0
          %436 = vmatpush.msra.mxu0 0.0
          %437 = vmatpush.msra.mxu0 0.0
          %438 = vmatpush.msra.mxu0 0.0
          %439 = vmatpush.msra.mxu0 0.0
          %440 = vmatpush.msra.mxu0 0.0
          %441 = vmatpush.msra.mxu0 0.0
          %442 = vmatpush.msra.mxu0 0.0
          %443 = vmatpush.msra.mxu0 0.0
          %444 = vmatpush.msra.mxu0 %v359
          %445 = vmatpush.msra.mxu0 %v357
          %446 = vmatpush.msra.mxu0 %v355
          %447 = vmatpush.msra.mxu0 %v353
          %448 = vmatmul.f32.gmra.mxu0 %v368
          %v449 = vpop.f32.mrf.mxu0
          %v450 = vadd.f32 %v363, %v449
          %451 = vmatmul.f32.gmra.mxu0 %v371
          %v452 = vpop.f32.mrf.mxu0
          %v453 = vadd.f32 %v363, %v452
          %454 = vmatmul.f32.gmra.mxu0 %v374
          %v455 = vpop.f32.mrf.mxu0
          %v456 = vadd.f32 %v363, %v455
          %457 = vmatmul.f32.gmra.mxu0 %v377
          %v458 = vpop.f32.mrf.mxu0
          %v459 = vadd.f32 %v363, %v458
          %460 = vmatmul.f32.gmra.mxu0 %v380
          %v461 = vpop.f32.mrf.mxu0
          %v462 = vadd.f32 %v363, %v461
          %463 = vmatmul.f32.gmra.mxu0 %v383
          %v464 = vpop.f32.mrf.mxu0
          %v465 = vadd.f32 %v363, %v464
          %466 = vmatmul.f32.gmra.mxu0 %v386
          %v467 = vpop.f32.mrf.mxu0
          %v468 = vadd.f32 %v363, %v467
          %469 = vmatmul.f32.gmra.mxu0 %v389
          %v470 = vpop.f32.mrf.mxu0
          %v471 = vadd.f32 %v363, %v470
          %472 = vdwg.mxu0
          %473 = vst [vmem:[#allocation2] sm:$0xff] %v409
          %474 = vst.msk [vmem:[#allocation2 + $0x8] sm:$0xff] %vm366, %v450
          %475 = vst [vmem:[#allocation2 + $0x10] sm:$0xff] %v412
          %476 = vst.msk [vmem:[#allocation2 + $0x18] sm:$0xff] %vm366, %v453
          %477 = vst [vmem:[#allocation2 + $0x20] sm:$0xff] %v415
          %478 = vst.msk [vmem:[#allocation2 + $0x28] sm:$0xff] %vm366, %v456
          %479 = vst [vmem:[#allocation2 + $0x30] sm:$0xff] %v418
          %480 = vst.msk [vmem:[#allocation2 + $0x38] sm:$0xff] %vm366, %v459
          %481 = vst [vmem:[#allocation2 + $0x40] sm:$0xff] %v421
          %482 = vst.msk [vmem:[#allocation2 + $0x48] sm:$0xff] %vm366, %v462
          %483 = vst [vmem:[#allocation2 + $0x50] sm:$0xff] %v424
          %484 = vst.msk [vmem:[#allocation2 + $0x58] sm:$0xff] %vm366, %v465
          %485 = vst [vmem:[#allocation2 + $0x60] sm:$0xff] %v427
          %486 = vst.msk [vmem:[#allocation2 + $0x68] sm:$0xff] %vm366, %v468
          %487 = vst [vmem:[#allocation2 + $0x70] sm:$0xff] %v430
          %488 = vst.msk [vmem:[#allocation2 + $0x78] sm:$0xff] %vm366, %v471
        $region48: #{tpu_custom_call.1} parent=43 // pred_fallthru
          _
        %s489 = smul.u32 %s29, 2
        %s490 = sadd.s32 %s489, %s30
        %s491 = smul.u32 %s490, 32
        %s492 = scalar_lea.vmem %s322, %s491
        %v493 = vld [vmem:[%s492] sm:$0xff]
        %v494 = vld [vmem:[%s492 + $0x8] sm:$0xff]
        %v495 = vld [vmem:[%s492 + $0x10] sm:$0xff]
        %v496 = vld [vmem:[%s492 + $0x18] sm:$0xff]
        %v497 = vld [vmem:[%s1] sm:$0xff]
        %v498 = vld [vmem:[%s1 + $0x8] sm:$0xff]
        %v499 = vld [vmem:[%s1 + $0x10] sm:$0xff]
        %v500 = vld [vmem:[%s1 + $0x18] sm:$0xff]
        %v501 = vld [vmem:[%s2] sm:$0x1]
        %v503 = vperm.slane %v501, 0
        %vm505 = vcmask 261120
        %v507 = vsel %vm505, %v493, 0
        %v510 = vsel %vm505, %v494, 0
        %v513 = vsel %vm505, %v495, 0
        %v516 = vsel %vm505, %v496, 0
        %518 = vmatpush.msra.mxu0 0.0
        %519 = vmatpush.msra.mxu0 0.0
        %520 = vmatpush.msra.mxu0 0.0
        %521 = vmatpush.msra.mxu0 0.0
        %522 = vmatpush.msra.mxu0 0.0
        %523 = vmatpush.msra.mxu0 0.0
        %524 = vmatpush.msra.mxu0 0.0
        %525 = vmatpush.msra.mxu0 0.0
        %526 = vmatpush.msra.mxu0 0.0
        %527 = vmatpush.msra.mxu0 0.0
        %528 = vmatpush.msra.mxu0 0.0
        %529 = vmatpush.msra.mxu0 0.0
        %530 = vmatpush.msra.mxu0 %v500
        %531 = vmatpush.msra.mxu0 %v499
        %532 = vmatpush.msra.mxu0 %v498
        %533 = vmatpush.msra.mxu0 %v497
        %534 = vmatmul.f32.gmra.mxu0 %v507
        %v535 = vpop.f32.mrf.mxu0
        %v536 = vadd.f32 %v503, %v535
        %537 = vmatmul.f32.gmra.mxu0 %v510
        %v538 = vpop.f32.mrf.mxu0
        %v539 = vadd.f32 %v503, %v538
        %540 = vmatmul.f32.gmra.mxu0 %v513
        %v541 = vpop.f32.mrf.mxu0
        %v542 = vadd.f32 %v503, %v541
        %543 = vmatmul.f32.gmra.mxu0 %v516
        %v544 = vpop.f32.mrf.mxu0
        %v545 = vadd.f32 %v503, %v544
        %546 = vdwg.mxu0
        %v547 = vld [vmem:[#allocation2] sm:$0xff]
        %v548 = vld [vmem:[#allocation2 + $0x10] sm:$0xff]
        %v549 = vld [vmem:[#allocation2 + $0x20] sm:$0xff]
        %v550 = vld [vmem:[#allocation2 + $0x30] sm:$0xff]
        %v551 = vld [vmem:[#allocation2 + $0x40] sm:$0xff]
        %v552 = vld [vmem:[#allocation2 + $0x50] sm:$0xff]
        %v553 = vld [vmem:[#allocation2 + $0x60] sm:$0xff]
        %v554 = vld [vmem:[#allocation2 + $0x70] sm:$0xff]
        %v555 = vld [vmem:[#allocation2 + $0x8] sm:$0xff]
        %v556 = vld [vmem:[#allocation2 + $0x18] sm:$0xff]
        %v557 = vld [vmem:[#allocation2 + $0x28] sm:$0xff]
        %v558 = vld [vmem:[#allocation2 + $0x38] sm:$0xff]
        %v559 = vld [vmem:[#allocation2 + $0x48] sm:$0xff]
        %v560 = vld [vmem:[#allocation2 + $0x58] sm:$0xff]
        %v561 = vld [vmem:[#allocation2 + $0x68] sm:$0xff]
        %v562 = vld [vmem:[#allocation2 + $0x78] sm:$0xff]
        %563 = vmatpush.xpose.msra.mxu0 0.0
        %564 = vmatpush.xpose.msra.mxu0 0.0
        %565 = vmatpush.xpose.msra.mxu0 0.0
        %566 = vmatpush.xpose.msra.mxu0 0.0
        %567 = vmatpush.xpose.msra.mxu0 0.0
        %568 = vmatpush.xpose.msra.mxu0 0.0
        %569 = vmatpush.xpose.msra.mxu0 0.0
        %570 = vmatpush.xpose.msra.mxu0 0.0
        %571 = vmatpush.xpose.msra.mxu0 %v554
        %572 = vmatpush.xpose.msra.mxu0 %v553
        %573 = vmatpush.xpose.msra.mxu0 %v552
        %574 = vmatpush.xpose.msra.mxu0 %v551
        %575 = vmatpush.xpose.msra.mxu0 %v550
        %576 = vmatpush.xpose.msra.mxu0 %v549
        %577 = vmatpush.xpose.msra.mxu0 %v548
        %578 = vmatpush.xpose.msra.mxu0 %v547
        %579 = vmatmul.f32.gmra.mxu0 %v536
        %v580 = vpop.f32.mrf.mxu0
        %v581 = vadd.f32 0.0, %v580
        %582 = vmatmul.f32.gmra.mxu0 %v539
        %v583 = vpop.f32.mrf.mxu0
        %v584 = vadd.f32 0.0, %v583
        %585 = vmatmul.f32.gmra.mxu0 %v542
        %v586 = vpop.f32.mrf.mxu0
        %v587 = vadd.f32 0.0, %v586
        %588 = vmatmul.f32.gmra.mxu0 %v545
        %v589 = vpop.f32.mrf.mxu0
        %v590 = vadd.f32 0.0, %v589
        %591 = vdwg.mxu0
        %vm592 = vcmask 523264
        %593 = vst.msk [vmem:[%s317] sm:$0xff] %vm592, %v581
        %594 = vst.msk [vmem:[%s317 + $0x8] sm:$0xff] %vm592, %v584
        %595 = vst.msk [vmem:[%s317 + $0x10] sm:$0xff] %vm592, %v587
        %596 = vst.msk [vmem:[%s317 + $0x18] sm:$0xff] %vm592, %v590
        %v597 = vsel %vm592, %v581, -inf
        %598 = vmax.xlane.f32.xlu0 %v597
        %v599 = vpop.xlane.xlu0 %598
        %v600 = vsel %vm592, %v584, -inf
        %601 = vmax.xlane.f32.xlu0 %v600
        %v602 = vpop.xlane.xlu0 %601
        %v603 = vsel %vm592, %v587, -inf
        %604 = vmax.xlane.f32.xlu0 %v603
        %v605 = vpop.xlane.xlu0 %604
        %v606 = vsel %vm592, %v590, -inf
        %607 = vmax.xlane.f32.xlu0 %v606
        %v608 = vpop.xlane.xlu0 %607
        %v609 = vsub.f32 %v581, %v599
        %v610 = vsub.f32 %v584, %v602
        %v611 = vsub.f32 %v587, %v605
        %v612 = vsub.f32 %v590, %v608
        %v613 = vmul.f32 %v609, 1.442695
        %v614 = vpow.pop %v613
        %v615 = vmul.f32 %v610, 1.442695
        %v616 = vpow.pop %v615
        %v617 = vmul.f32 %v611, 1.442695
        %v618 = vpow.pop %v617
        %v619 = vmul.f32 %v612, 1.442695
        %v620 = vpow.pop %v619
        %v621 = vsel %vm592, %v614, 0.0
        %622 = vadd.xlane.f32.xlu0 %v621
        %v623 = vpop.xlane.xlu0 %622
        %v624 = vsel %vm592, %v616, 0.0
        %625 = vadd.xlane.f32.xlu0 %v624
        %v626 = vpop.xlane.xlu0 %625
        %v627 = vsel %vm592, %v618, 0.0
        %628 = vadd.xlane.f32.xlu0 %v627
        %v629 = vpop.xlane.xlu0 %628
        %v630 = vsel %vm592, %v620, 0.0
        %631 = vadd.xlane.f32.xlu0 %v630
        %v632 = vpop.xlane.xlu0 %631
        %v634 = vsel %vm592, %v614, 0
        %v637 = vsel %vm592, %v616, 0
        %v640 = vsel %vm592, %v618, 0
        %v643 = vsel %vm592, %v620, 0
        %645 = vmatpush.msra.mxu0 0.0
        %646 = vmatpush.msra.mxu0 0.0
        %647 = vmatpush.msra.mxu0 0.0
        %648 = vmatpush.msra.mxu0 0.0
        %649 = vmatpush.msra.mxu0 0.0
        %650 = vmatpush.msra.mxu0 0.0
        %651 = vmatpush.msra.mxu0 0.0
        %652 = vmatpush.msra.mxu0 0.0
        %653 = vmatpush.msra.mxu0 %v562
        %654 = vmatpush.msra.mxu0 %v561
        %655 = vmatpush.msra.mxu0 %v560
        %656 = vmatpush.msra.mxu0 %v559
        %657 = vmatpush.msra.mxu0 %v558
        %658 = vmatpush.msra.mxu0 %v557
        %659 = vmatpush.msra.mxu0 %v556
        %660 = vmatpush.msra.mxu0 %v555
        %661 = vmatmul.f32.gmra.mxu0 %v634
        %v662 = vpop.f32.mrf.mxu0
        %v663 = vadd.f32 0.0, %v662
        %664 = vmatmul.f32.gmra.mxu0 %v637
        %v665 = vpop.f32.mrf.mxu0
        %v666 = vadd.f32 0.0, %v665
        %667 = vmatmul.f32.gmra.mxu0 %v640
        %v668 = vpop.f32.mrf.mxu0
        %v669 = vadd.f32 0.0, %v668
        %670 = vmatmul.f32.gmra.mxu0 %v643
        %v671 = vpop.f32.mrf.mxu0
        %v672 = vadd.f32 0.0, %v671
        %673 = vdwg.mxu0
        %v674 = vrcp.pop %v623
        %v675 = vmul.f32 %v623, %v674
        %v676 = vsub.f32 1.0, %v675
        %v677 = vmul.f32 %v674, %v676
        %v678 = vadd.f32 %v674, %v677
        %vm679 = vweird.f32 %v623
        %vm680 = vweird.f32 %v674
        %vm681 = vmor %vm679, %vm680
        %v682 = vsel %vm681, %v674, %v678
        %v683 = vand.u32 2147483647, %v623
        %vm684 = vcmp.eq.f32.partialorder %v683, 8.507059e+37
        %v685 = vand.u32 %v623, 2147483648
        %v686 = vor.u32 1.1754944e-38, %v685
        %v687 = vsel %vm684, %v686, %v682
        %v688 = vmul.f32 1.0, %v687
        %v689 = vrcp.pop %v626
        %v690 = vmul.f32 %v626, %v689
        %v691 = vsub.f32 1.0, %v690
        %v692 = vmul.f32 %v689, %v691
        %v693 = vadd.f32 %v689, %v692
        %vm694 = vweird.f32 %v626
        %vm695 = vweird.f32 %v689
        %vm696 = vmor %vm694, %vm695
        %v697 = vsel %vm696, %v689, %v693
        %v698 = vand.u32 2147483647, %v626
        %vm699 = vcmp.eq.f32.partialorder %v698, 8.507059e+37
        %v700 = vand.u32 %v626, 2147483648
        %v701 = vor.u32 1.1754944e-38, %v700
        %v702 = vsel %vm699, %v701, %v697
        %v703 = vmul.f32 1.0, %v702
        %v704 = vrcp.pop %v629
        %v705 = vmul.f32 %v629, %v704
        %v706 = vsub.f32 1.0, %v705
        %v707 = vmul.f32 %v704, %v706
        %v708 = vadd.f32 %v704, %v707
        %vm709 = vweird.f32 %v629
        %vm710 = vweird.f32 %v704
        %vm711 = vmor %vm709, %vm710
        %v712 = vsel %vm711, %v704, %v708
        %v713 = vand.u32 2147483647, %v629
        %vm714 = vcmp.eq.f32.partialorder %v713, 8.507059e+37
        %v715 = vand.u32 %v629, 2147483648
        %v716 = vor.u32 1.1754944e-38, %v715
        %v717 = vsel %vm714, %v716, %v712
        %v718 = vmul.f32 1.0, %v717
        %v719 = vrcp.pop %v632
        %v720 = vmul.f32 %v632, %v719
        %v721 = vsub.f32 1.0, %v720
        %v722 = vmul.f32 %v719, %v721
        %v723 = vadd.f32 %v719, %v722
        %vm724 = vweird.f32 %v632
        %vm725 = vweird.f32 %v719
        %vm726 = vmor %vm724, %vm725
        %v727 = vsel %vm726, %v719, %v723
        %v728 = vand.u32 2147483647, %v632
        %vm729 = vcmp.eq.f32.partialorder %v728, 8.507059e+37
        %v730 = vand.u32 %v632, 2147483648
        %v731 = vor.u32 1.1754944e-38, %v730
        %v732 = vsel %vm729, %v731, %v727
        %v733 = vmul.f32 1.0, %v732
        %s734 = sld [smem:[#allocation3]]
        %v735 = vmul.f32 %v663, %v688
        %v736 = vmul.f32 %v666, %v703
        %v737 = vmul.f32 %v669, %v718
        %v738 = vmul.f32 %v672, %v733
        %v739 = vstv %s734
        %v740 = vmul.f32 %v739, %v735
        %v741 = vmul.f32 %v739, %v736
        %v742 = vmul.f32 %v739, %v737
        %v743 = vmul.f32 %v739, %v738
        %v744 = vadd.f32 %v740, %v493
        %v745 = vadd.f32 %v741, %v494
        %v746 = vadd.f32 %v742, %v495
        %v747 = vadd.f32 %v743, %v496
        %748 = vst.msk [vmem:[%s333] sm:$0xff] %vm505, %v744
        %749 = vst.msk [vmem:[%s333 + $0x8] sm:$0xff] %vm505, %v745
        %750 = vst.msk [vmem:[%s333 + $0x10] sm:$0xff] %vm505, %v746
        %751 = vst.msk [vmem:[%s333 + $0x18] sm:$0xff] %vm505, %v747
        %s752 = smul.u32 %s29, 2
        %s753 = sadd.s32 %s752, %s30
        %s754 = smul.u32 4, %s753
        %p755 = scmp.lt.s32.totalorder %s28, 1
        %s756 = scalar_select %p755, %s28, 1
        %p757 = scmp.lt.s32.totalorder %s754, 7
        %s758 = scalar_select %p757, %s754, 7
        %s759 = smul.addr %s756, 8
        %s760 = sadd.s32 %s758, %s759
        %s761 = smul.addr %s760, 8
        %s762 = scalar_lea.vmem %s6, %s761
        %s763 = sand.u32 %s219, 1
        %s764 = scalar_lea.sflag [#allocation5], %s763
        %s765 = sand.u32 %s219, 1
        %s766 = smul.addr %s765, 32
        %s767 = scalar_lea.vmem [#allocation4], %s766
        // Predicated region
        $region49: #{tpu_custom_call.1} parent=43 // pred_check
          %p768 = pneg %p197
        $region50: #{tpu_custom_call.1} parent=43 // pred_check_branch
          %770 = sbr.rel (%p768) target = $region52
        $region51: #{tpu_custom_call.1} parent=43 // pred_region
          %s771 = smul.u32 %s29, 2
          %s772 = sadd.s32 %s771, %s30
          %s773 = smul.u32 4, %s772
        $region52: #{tpu_custom_call.1} parent=43 // pred_fallthru
          _
        // Predicated region
        $region53: #{tpu_custom_call.1} parent=43 // pred_check
          %p774 = pneg %p229
        $region54: #{tpu_custom_call.1} parent=43 // pred_check_branch
          %776 = sbr.rel (%p774) target = $region56
        $region55: #{tpu_custom_call.1} parent=43 // pred_region
          %s777 = smul.u32 %s29, 2
          %s778 = sadd.s32 %s777, %s30
          %s779 = smul.u32 4, %s778
          %781 = vsyncadd %s764, 0
          %s782 = smul.addr %s28, 8
          %s783 = sadd.s32 %s779, %s782
          %s784 = smul.addr %s783, 8
          %s785 = scalar_lea.hbm %s7, %s784
          %s786 = sshll.u32 %s767, 4
          %s787 = int_to_ptr.vmem [resolvable:$true] %s786
          %s788 = sshll.u32 %s785, 4
          %s789 = int_to_ptr.hbm [resolvable:$true] %s788
          %794 = dma.vmem_to_hbm [thread:$0]  %s787, 512, %s789, %s764, 128, 128, 8
        $region56: #{tpu_custom_call.1} parent=43 // pred_fallthru
          _
      $region44: #{tpu_custom_call.1} parent=5 // pred_fallthru
        _
      %p795 = scmp.le.s32.totalorder 2, %s18
      // Predicated region
      $region57: #{tpu_custom_call.1} parent=5 // pred_check
        %p796 = pneg %p795
      $region58: #{tpu_custom_call.1} parent=5 // pred_check_branch
        %798 = sbr.rel (%p796) target = $region60
      $region59: #{tpu_custom_call.1} parent=5 // pred_region
        %s799 = ssub.s32 %s18, 2
        // Predicated region
        $region61: #{tpu_custom_call.1} parent=59 // pred_check
          %p800 = pneg %p203
        $region62: #{tpu_custom_call.1} parent=59 // pred_check_branch
          %802 = sbr.rel (%p800) target = $region64
        $region63: #{tpu_custom_call.1} parent=59 // pred_region
          %s803 = smul.u32 %s32, 2
          %s804 = sadd.s32 %s803, %s33
          %s805 = smul.u32 4, %s804
          %p806 = scmp.lt.s32.totalorder %s31, 1
          %s807 = scalar_select %p806, %s31, 1
          %p808 = scmp.lt.s32.totalorder %s805, 7
          %s809 = scalar_select %p808, %s805, 7
          %s810 = smul.addr %s807, 8
          %s811 = sadd.s32 %s809, %s810
          %s812 = smul.addr %s811, 8
          %s813 = scalar_lea.vmem %s6, %s812
        $region64: #{tpu_custom_call.1} parent=59 // pred_fallthru
          _
        // Predicated region
        $region65: #{tpu_custom_call.1} parent=59 // pred_check
          %p814 = pneg %p235
        $region66: #{tpu_custom_call.1} parent=59 // pred_check_branch
          %816 = sbr.rel (%p814) target = $region68
        $region67: #{tpu_custom_call.1} parent=59 // pred_region
          %s817 = sand.u32 %s220, 1
          %s818 = scalar_lea.sflag [#allocation5], %s817
          %s819 = sand.u32 %s220, 1
          %s820 = smul.addr %s819, 32
          %s821 = scalar_lea.vmem [#allocation4], %s820
          %823 = dma.done %s818, 512
        $region68: #{tpu_custom_call.1} parent=59 // pred_fallthru
          _
      $region60: #{tpu_custom_call.1} parent=5 // pred_fallthru
        _
    $region6: #{tpu_custom_call.1} parent=1 // loop_footer
      %s22 = sadd.s32 1, %s18
    $region7: #{tpu_custom_call.1} parent=1 // loop_footer_branch
      %17 = sbr.rel target = $region3
    $region8: #{tpu_custom_call.1} parent=1 // loop_exit
      _
    %824 = vsyncpa [#allocation5], 1
    %s825 = scalar_lea.sflag [#allocation5], 1
    %826 = vsyncpa %s825, 1

</llo_original>
